<compile_context>
chip_gen: v6e
topology: v6e:2x2x1
jax: 0.10.0
libtpu: 0.0.40
codegen_flags: <defaults>
</compile_context>

<pallas_src>
import jax
import jax.numpy as jnp
import numpy as np
from jax.experimental import pallas as pl
from jax.experimental.pallas import tpu as pltpu

LANE = 128      # padded feature width for all activations / weight columns
NC_PAD = 128    # lane-dense classifier output width (num_class padded to 128)

# static row offsets inside the per-cell packed operand [_PACK_ROWS, 2*LANE]
_WPRE = (0, 2 * LANE)            # [256,256] block-diag(wph, wpx)
_WMID = (2 * LANE, 6 * LANE)     # [512,256] rows: hh->W0 | xh->Wr | t1->-W1 | ax->Wi
_BPRE = 6 * LANE                 # [1,256]  [bph | bpx]
_BMID = 6 * LANE + 8             # [1,256]  [bc  | ba ]
_PACK_ROWS = 6 * LANE + 16       # 784 (every block offset is a multiple of 8)


def _mm(a, b):
    # exact-f32 matmul for pack-time folding and the pure-JAX reference
    return jnp.dot(a, b, precision=jax.lax.Precision.HIGHEST)


# ------------------------------------------------------------------ kernel

def _make_kernel(num_cells, compute_dtype):
    cdt = compute_dtype

    def kernel(*refs):
        x_ref, s_ref = refs[0], refs[1]
        pack_refs = refs[2:2 + num_cells]
        clf_ref = refs[2 + num_cells]
        o_ref = refs[3 + num_cells]

        f32 = jnp.float32
        s = s_ref[...]                        # (N, N)   gcn-normalized A
        x0 = x_ref[...].astype(f32)           # (N, 128) lane-padded features

        # representations carry the pre-(cell linear) sums; wl/bl are folded
        # into downstream weights at pack time.
        h_repr, x_repr = x0, x0
        for pack_ref in pack_refs:
            wpre = pack_ref[_WPRE[0]:_WPRE[1], :]            # (256, 256)
            wmid = pack_ref[_WMID[0]:_WMID[1], :]            # (512, 256)
            bpre = pack_ref[_BPRE:_BPRE + 1, :].astype(f32)  # (1, 256)
            bmid = pack_ref[_BMID:_BMID + 1, :].astype(f32)  # (1, 256)

            # 1) fused preprocessors:  [h | x] @ blockdiag(wph, wpx) -> [hh | xh]
            lhs_pre = jnp.concatenate([h_repr, x_repr], axis=-1).astype(cdt)
            pre = jnp.dot(lhs_pre, wpre, preferred_element_type=f32) + bpre

            # 2) fused propagation: A_norm @ [hh | xh] -> [t1 | ax]
            prop = jnp.dot(s, pre.astype(cdt), preferred_element_type=f32)

            # 3) fused Cheb + ARMA: [hh|xh|t1|ax] @ Wmid -> [cheb_pre | arma_pre]
            lhs_mid = jnp.concatenate([pre, prop], axis=-1).astype(cdt)
            mid = jnp.dot(lhs_mid, wmid, preferred_element_type=f32) + bmid

            cheb = mid[:, :LANE]
            arma = mid[:, LANE:]
            o1 = jnp.maximum(cheb, 0.01 * cheb)   # leaky_relu
            o2 = jnp.maximum(arma, 0.0)           # relu (leaky_relu of relu == relu)
            h_repr, x_repr = x_repr, o1 + o2      # cell Linear folded downstream

        # classifier (+ folded last-cell Linear) + log_softmax, lane-padded.
        # Padded weight cols are 0; padded bias cols are -1e30 -> exp underflows.
        wclf = clf_ref[:NC_PAD, :]
        bclf = clf_ref[NC_PAD:NC_PAD + 1, :].astype(jnp.float32)
        logits = jnp.dot(x_repr.astype(cdt), wclf,
                         preferred_element_type=jnp.float32) + bclf
        m = jnp.max(logits, axis=-1, keepdims=True)
        sc = logits - m
        lse = jnp.log(jnp.sum(jnp.exp(sc), axis=-1, keepdims=True))
        o_ref[...] = (sc - lse).astype(o_ref.dtype)

    return kernel


# ------------------------------------------------------------------ packing

def _pad2(a, rows, cols):
    out = jnp.zeros((rows, cols), jnp.float32)
    return out.at[:a.shape[0], :a.shape[1]].set(a.astype(jnp.float32))


def pack_model_params(cell_params, clf_w, clf_b, compute_dtype=jnp.float32):
    """Fold each cell's output Linear into its downstream linear consumers and
    pack each cell's weights into one lane-dense, 8-row-aligned [784,256] array.
    """
    # ---- fold wl/bl of cell i into consumers of o3_i:
    #      preprocessor_x of cell i+1, preprocessor_h of cell i+2, classifier.
    wpx_f, bpx_f, wph_f, bph_f = [], [], [], []
    for i, p in enumerate(cell_params):
        if i == 0:
            wpx_f.append(p["wpx"]); bpx_f.append(p["bpx"])
        else:
            q = cell_params[i - 1]
            wpx_f.append(_mm(q["wl"], p["wpx"]))
            bpx_f.append(_mm(q["bl"], p["wpx"]) + p["bpx"])
        if i <= 1:
            wph_f.append(p["wph"]); bph_f.append(p["bph"])
        else:
            q = cell_params[i - 2]
            wph_f.append(_mm(q["wl"], p["wph"]))
            bph_f.append(_mm(q["bl"], p["wph"]) + p["bph"])
    last = cell_params[-1]
    wclf_f = _mm(last["wl"], clf_w)
    bclf_f = _mm(last["bl"], clf_w) + clf_b

    packs = []
    z = jnp.zeros((LANE, LANE), jnp.float32)
    for i, p in enumerate(cell_params):
        wpre = jnp.concatenate([
            jnp.concatenate([_pad2(wph_f[i], LANE, LANE), z], axis=1),
            jnp.concatenate([z, _pad2(wpx_f[i], LANE, LANE)], axis=1)], axis=0)
        # rows of Wmid follow the [hh | xh | t1 | ax] contraction layout;
        # Cheb's L_hat = -A_norm sign is folded into the t1 block.
        wmid = jnp.concatenate([
            jnp.concatenate([_pad2(p["wc0"], LANE, LANE), z], axis=1),
            jnp.concatenate([z, _pad2(p["war"], LANE, LANE)], axis=1),
            jnp.concatenate([-_pad2(p["wc1"], LANE, LANE), z], axis=1),
            jnp.concatenate([z, _pad2(p["wai"], LANE, LANE)], axis=1)], axis=0)
        bpre = _pad2(jnp.concatenate(
            [_pad2(bph_f[i], 1, LANE), _pad2(bpx_f[i], 1, LANE)], axis=1), 8, 2 * LANE)
        bmid = _pad2(jnp.concatenate(
            [_pad2(p["bc"], 1, LANE), _pad2(p["ba"], 1, LANE)], axis=1), 8, 2 * LANE)
        pack = jnp.concatenate([wpre, wmid, bpre, bmid], axis=0)   # [784, 256]
        assert pack.shape == (_PACK_ROWS, 2 * LANE)
        packs.append(pack.astype(compute_dtype))

    nc = clf_w.shape[1]
    wclf_p = _pad2(wclf_f, NC_PAD, NC_PAD)
    bclf_row = jnp.full((1, NC_PAD), -1e30, jnp.float32).at[:, :nc].set(bclf_f)
    bclf_p = jnp.zeros((8, NC_PAD), jnp.float32).at[0:1, :].set(bclf_row)
    clf_pack = jnp.concatenate([wclf_p, bclf_p], axis=0).astype(compute_dtype)
    return packs, clf_pack


# ------------------------------------------------------------------ glue

def build_propagation_matrix(edge_index, edge_weight, num_nodes):
    """Dense gcn-normalized propagation matrix A_norm (out = A_norm @ x).
    ChebConv's L_hat is exactly -A_norm (sym norm, lambda_max=2); the sign is
    folded into the packed mid-weight so only one [N,N] matrix is DMA'd."""
    src, dst = edge_index[0], edge_index[1]
    a = jnp.zeros((num_nodes, num_nodes), jnp.float32).at[dst, src].add(edge_weight)
    deg = jnp.zeros((num_nodes,), jnp.float32).at[dst].add(edge_weight)
    dinv = jnp.where(deg > 0, 1.0 / jnp.sqrt(deg), 0.0)
    return dinv[:, None] * a * dinv[None, :]


def nas_azpo_forward(x, s_arma, cell_params, clf_w, clf_b, *,
                     compute_dtype=jnp.float32):
    """x: [B, N, F] per-graph node features; s_arma: [B, N, N] per-graph A_norm.
    Returns [B, N, num_class] log-probabilities."""
    B, N, F = x.shape
    num_class = clf_w.shape[1]
    assert F <= LANE and num_class <= NC_PAD

    packs, clf_pack = pack_model_params(cell_params, clf_w, clf_b, compute_dtype)
    x_pad = jnp.zeros((B, N, LANE), jnp.float32).at[:, :, :F].set(x)
    x_pad = x_pad.astype(compute_dtype)
    s_c = s_arma.astype(compute_dtype)

    kernel = _make_kernel(len(cell_params), compute_dtype)

    # Per-graph blocks stream over the batch grid axis; weights use a constant
    # index_map so they stay resident in VMEM across grid steps.
    # (For large N, additionally tile s_arma as (row_block, N) over a second
    #  grid axis; unnecessary at N=16.)
    in_specs = [
        pl.BlockSpec((None, N, LANE), lambda b: (b, 0, 0)),   # x  (one graph/step)
        pl.BlockSpec((None, N, N), lambda b: (b, 0, 0)),      # A_norm
    ]
    for pk in packs:
        in_specs.append(pl.BlockSpec(pk.shape, lambda b: (0, 0)))
    in_specs.append(pl.BlockSpec(clf_pack.shape, lambda b: (0, 0)))

    out_pad = pl.pallas_call(
        kernel,
        out_shape=jax.ShapeDtypeStruct((B, N, NC_PAD), jnp.float32),
        grid=(B,),
        in_specs=in_specs,
        out_specs=pl.BlockSpec((None, N, NC_PAD), lambda b: (b, 0, 0)),
        compiler_params=pltpu.CompilerParams(
            dimension_semantics=("parallel",)),   # shards across v7x's 2 TCs
    )(x_pad, s_c, *packs, clf_pack)
    return out_pad[:, :, :num_class]


def init_cell_params(key, his_dim, cur_dim, hidden_dim, output_dim):
    ks = jax.random.split(key, 16)
    scale = 0.1

    def w(k, shape):
        return (scale * jax.random.normal(k, shape)).astype(jnp.float32)

    return {
        # nn.Linear weights stored transposed as [in, out]; biases as [1, out]
        "wph": w(ks[0], (his_dim, hidden_dim)), "bph": w(ks[1], (1, hidden_dim)),
        "wpx": w(ks[2], (cur_dim, hidden_dim)), "bpx": w(ks[3], (1, hidden_dim)),
        # ChebConv K=2 (two bias-free Linears + one bias)
        "wc0": w(ks[4], (hidden_dim, output_dim)),
        "wc1": w(ks[5], (hidden_dim, output_dim)),
        "bc": w(ks[6], (1, output_dim)),
        # ARMAConv (1 stack, 1 layer): init_weight, root_weight, bias
        "wai": w(ks[7], (hidden_dim, output_dim)),
        "war": w(ks[8], (hidden_dim, output_dim)),
        "ba": w(ks[9], (1, output_dim)),
        # cell output linear
        "wl": w(ks[10], (output_dim, output_dim)), "bl": w(ks[11], (1, output_dim)),
    }


# pure-JAX reference (one graph) for the correctness check
def _reference_forward(x, s_arma, cell_params, clf_w, clf_b):
    s_cheb = -s_arma
    lrelu = lambda v: jnp.where(v >= 0, v, 0.01 * v)
    h, xx = x, x
    for p in cell_params:
        hh = _mm(h, p["wph"]) + p["bph"]
        xh = _mm(xx, p["wpx"]) + p["bpx"]
        cheb = _mm(hh, p["wc0"]) + _mm(_mm(s_cheb, hh), p["wc1"]) + p["bc"]
        arma = jnp.maximum(_mm(s_arma, _mm(xh, p["wai"])) + _mm(xh, p["war"]) + p["ba"], 0.0)
        o3 = _mm(lrelu(cheb) + lrelu(arma), p["wl"]) + p["bl"]
        h, xx = xx, o3
    logits = _mm(xx, clf_w) + clf_b
    return jax.nn.log_softmax(logits, axis=-1)


# ------------------------------------------------------------------ main

if __name__ == "__main__":
    key = jax.random.PRNGKey(0)
    k_x, k_w, k_c0, k_c1, k_cw, k_cb = jax.random.split(key, 6)

    # Small shapes consistent with the module; B independent graphs give the
    # grid its parallel axis (>=2 so both v7x TensorCores are used).
    B = 4                  # batch of graphs
    N = 16                 # nodes per graph
    features_num = 8
    num_class = 4
    hidden = 32
    hidden_dim = max(hidden, num_class * 2)   # 32
    output_dim = hidden_dim

    # per-graph node features
    x = jax.random.normal(k_x, (B, N, features_num), dtype=jnp.float32)

    # B symmetric ring graphs with per-graph symmetric positive weights
    src = jnp.arange(N, dtype=jnp.int32)
    dst = (src + 1) % N
    edge_index = jnp.concatenate(
        [jnp.stack([src, dst], axis=0), jnp.stack([dst, src], axis=0)], axis=1)
    w_und = jax.random.uniform(k_w, (B, N), minval=0.5, maxval=1.5).astype(jnp.float32)
    edge_weight = jnp.concatenate([w_und, w_und], axis=1)          # (B, 2N)
    s_arma = jnp.stack([build_propagation_matrix(edge_index, edge_weight[b], N)
                        for b in range(B)], axis=0)                # (B, N, N)

    # deterministic parameters (synthetic, not a checkpoint)
    his_dim, cur_dim = features_num, features_num
    cell_params = []
    for cell_key in (k_c0, k_c1):
        cell_params.append(init_cell_params(cell_key, his_dim, cur_dim,
                                            hidden_dim, output_dim))
        his_dim, cur_dim = cur_dim, output_dim
    clf_w = (0.1 * jax.random.normal(k_cw, (cur_dim, num_class))).astype(jnp.float32)
    clf_b = (0.1 * jax.random.normal(k_cb, (1, num_class))).astype(jnp.float32)

    ref = jax.vmap(lambda xb, sb: _reference_forward(
        xb, sb, cell_params, clf_w, clf_b))(x, s_arma)

    # f32 path (strict check)
    out = nas_azpo_forward(x, s_arma, cell_params, clf_w, clf_b)
    out = jax.block_until_ready(out)
    np.testing.assert_allclose(np.asarray(out), np.asarray(ref), rtol=1e-4, atol=1e-4)

    # bf16 MXU-operand path (v6e/v7x feedback): bf16 inputs, f32 accumulation,
    # f32 activation/softmax math — checked at a looser tolerance.
    out_bf16 = nas_azpo_forward(x, s_arma, cell_params, clf_w, clf_b,
                                compute_dtype=jnp.bfloat16)
    out_bf16 = jax.block_until_ready(out_bf16)
    np.testing.assert_allclose(np.asarray(out_bf16), np.asarray(ref),
                               rtol=1e-1, atol=1e-1)

    print("KERNEL_OK")
</pallas_src>

<mosaic_0001>
module attributes {stable_mosaic.version = 11 : i64} {
  func.func @kernel(%arg0: i32, %arg1: memref<1x16x128xf32, #tpu.memory_space<vmem>>, %arg2: memref<1x16x16xf32, #tpu.memory_space<vmem>>, %arg3: memref<784x256xf32, #tpu.memory_space<vmem>>, %arg4: memref<784x256xf32, #tpu.memory_space<vmem>>, %arg5: memref<136x128xf32, #tpu.memory_space<vmem>>, %arg6: memref<1x16x128xf32, #tpu.memory_space<vmem>>) attributes {dimension_semantics = [#tpu.dimension_semantics<parallel>], iteration_bounds = array<i64: 4>, scalar_prefetch = 0 : i64, scratch_operands = 0 : i64, tpu.core_type = #tpu.core_type<tc>, window_params = [{transform_indices = @transform_0, window_bounds = array<i64: 1, 16, 128>}, {transform_indices = @transform_1, window_bounds = array<i64: 1, 16, 16>}, {pipeline_mode = #tpu.pipeline_mode<synchronous>, transform_indices = @transform_2, window_bounds = array<i64: 784, 256>}, {pipeline_mode = #tpu.pipeline_mode<synchronous>, transform_indices = @transform_3, window_bounds = array<i64: 784, 256>}, {pipeline_mode = #tpu.pipeline_mode<synchronous>, transform_indices = @transform_4, window_bounds = array<i64: 136, 128>}, {transform_indices = @transform_5, window_bounds = array<i64: 1, 16, 128>}]} {
    %c0 = arith.constant 0 : index
    %c0_0 = arith.constant 0 : index
    %c0_1 = arith.constant 0 : index
    %0 = vector.load %arg2[%c0, %c0_0, %c0_1] : memref<1x16x16xf32, #tpu.memory_space<vmem>>, vector<1x16x16xf32>
    %1 = vector.shape_cast %0 : vector<1x16x16xf32> to vector<16x16xf32>
    %c0_2 = arith.constant 0 : index
    %c0_3 = arith.constant 0 : index
    %c0_4 = arith.constant 0 : index
    %2 = vector.load %arg1[%c0_2, %c0_3, %c0_4] : memref<1x16x128xf32, #tpu.memory_space<vmem>>, vector<1x16x128xf32>
    %3 = vector.shape_cast %2 : vector<1x16x128xf32> to vector<16x128xf32>
    %c0_5 = arith.constant 0 : index
    %c0_6 = arith.constant 0 : index
    %4 = vector.load %arg3[%c0_5, %c0_6] : memref<784x256xf32, #tpu.memory_space<vmem>>, vector<256x256xf32>
    %c256 = arith.constant 256 : index
    %c0_7 = arith.constant 0 : index
    %5 = vector.load %arg3[%c256, %c0_7] : memref<784x256xf32, #tpu.memory_space<vmem>>, vector<512x256xf32>
    %c768 = arith.constant 768 : index
    %c0_8 = arith.constant 0 : index
    %6 = vector.load %arg3[%c768, %c0_8] : memref<784x256xf32, #tpu.memory_space<vmem>>, vector<1x256xf32>
    %c776 = arith.constant 776 : index
    %c0_9 = arith.constant 0 : index
    %7 = vector.load %arg3[%c776, %c0_9] : memref<784x256xf32, #tpu.memory_space<vmem>>, vector<1x256xf32>
    %8 = tpu.concatenate %3, %3 in 1 : vector<16x128xf32>, vector<16x128xf32> -> vector<16x256xf32>
    %cst = arith.constant dense<0.000000e+00> : vector<16x256xf32>
    %9 = tpu.matmul %8, %4, %cst {dimension_numbers = #tpu.dot_dimension_numbers<[1], [0], [0], [1], [0, 0, 1, 1], [], []>} : vector<16x256xf32>, vector<256x256xf32>, vector<16x256xf32> -> vector<16x256xf32>
    %10 = vector.broadcast %6 : vector<1x256xf32> to vector<16x256xf32>
    %11 = arith.addf %9, %10 : vector<16x256xf32>
    %cst_10 = arith.constant dense<0.000000e+00> : vector<16x256xf32>
    %12 = tpu.matmul %1, %11, %cst_10 {dimension_numbers = #tpu.dot_dimension_numbers<[1], [0], [0], [1], [0, 0, 1, 1], [], []>} : vector<16x16xf32>, vector<16x256xf32>, vector<16x256xf32> -> vector<16x256xf32>
    %13 = tpu.concatenate %11, %12 in 1 : vector<16x256xf32>, vector<16x256xf32> -> vector<16x512xf32>
    %cst_11 = arith.constant dense<0.000000e+00> : vector<16x256xf32>
    %14 = tpu.matmul %13, %5, %cst_11 {dimension_numbers = #tpu.dot_dimension_numbers<[1], [0], [0], [1], [0, 0, 1, 1], [], []>} : vector<16x512xf32>, vector<512x256xf32>, vector<16x256xf32> -> vector<16x256xf32>
    %15 = vector.broadcast %7 : vector<1x256xf32> to vector<16x256xf32>
    %16 = arith.addf %14, %15 : vector<16x256xf32>
    %17 = vector.extract_strided_slice %16 {offsets = [0, 0], sizes = [16, 128], strides = [1, 1]} : vector<16x256xf32> to vector<16x128xf32>
    %18 = vector.extract_strided_slice %16 {offsets = [0, 128], sizes = [16, 128], strides = [1, 1]} : vector<16x256xf32> to vector<16x128xf32>
    %cst_12 = arith.constant 0.00999999977 : f32
    %19 = vector.broadcast %cst_12 : f32 to vector<16x128xf32>
    %20 = arith.mulf %19, %17 : vector<16x128xf32>
    %21 = arith.maximumf %17, %20 : vector<16x128xf32>
    %cst_13 = arith.constant 0.000000e+00 : f32
    %22 = vector.broadcast %cst_13 : f32 to vector<16x128xf32>
    %23 = arith.maximumf %18, %22 : vector<16x128xf32>
    %24 = arith.addf %21, %23 : vector<16x128xf32>
    %c0_14 = arith.constant 0 : index
    %c0_15 = arith.constant 0 : index
    %25 = vector.load %arg4[%c0_14, %c0_15] : memref<784x256xf32, #tpu.memory_space<vmem>>, vector<256x256xf32>
    %c256_16 = arith.constant 256 : index
    %c0_17 = arith.constant 0 : index
    %26 = vector.load %arg4[%c256_16, %c0_17] : memref<784x256xf32, #tpu.memory_space<vmem>>, vector<512x256xf32>
    %c768_18 = arith.constant 768 : index
    %c0_19 = arith.constant 0 : index
    %27 = vector.load %arg4[%c768_18, %c0_19] : memref<784x256xf32, #tpu.memory_space<vmem>>, vector<1x256xf32>
    %c776_20 = arith.constant 776 : index
    %c0_21 = arith.constant 0 : index
    %28 = vector.load %arg4[%c776_20, %c0_21] : memref<784x256xf32, #tpu.memory_space<vmem>>, vector<1x256xf32>
    %29 = tpu.concatenate %3, %24 in 1 : vector<16x128xf32>, vector<16x128xf32> -> vector<16x256xf32>
    %cst_22 = arith.constant dense<0.000000e+00> : vector<16x256xf32>
    %30 = tpu.matmul %29, %25, %cst_22 {dimension_numbers = #tpu.dot_dimension_numbers<[1], [0], [0], [1], [0, 0, 1, 1], [], []>} : vector<16x256xf32>, vector<256x256xf32>, vector<16x256xf32> -> vector<16x256xf32>
    %31 = vector.broadcast %27 : vector<1x256xf32> to vector<16x256xf32>
    %32 = arith.addf %30, %31 : vector<16x256xf32>
    %cst_23 = arith.constant dense<0.000000e+00> : vector<16x256xf32>
    %33 = tpu.matmul %1, %32, %cst_23 {dimension_numbers = #tpu.dot_dimension_numbers<[1], [0], [0], [1], [0, 0, 1, 1], [], []>} : vector<16x16xf32>, vector<16x256xf32>, vector<16x256xf32> -> vector<16x256xf32>
    %34 = tpu.concatenate %32, %33 in 1 : vector<16x256xf32>, vector<16x256xf32> -> vector<16x512xf32>
    %cst_24 = arith.constant dense<0.000000e+00> : vector<16x256xf32>
    %35 = tpu.matmul %34, %26, %cst_24 {dimension_numbers = #tpu.dot_dimension_numbers<[1], [0], [0], [1], [0, 0, 1, 1], [], []>} : vector<16x512xf32>, vector<512x256xf32>, vector<16x256xf32> -> vector<16x256xf32>
    %36 = vector.broadcast %28 : vector<1x256xf32> to vector<16x256xf32>
    %37 = arith.addf %35, %36 : vector<16x256xf32>
    %38 = vector.extract_strided_slice %37 {offsets = [0, 0], sizes = [16, 128], strides = [1, 1]} : vector<16x256xf32> to vector<16x128xf32>
    %39 = vector.extract_strided_slice %37 {offsets = [0, 128], sizes = [16, 128], strides = [1, 1]} : vector<16x256xf32> to vector<16x128xf32>
    %cst_25 = arith.constant 0.00999999977 : f32
    %40 = vector.broadcast %cst_25 : f32 to vector<16x128xf32>
    %41 = arith.mulf %40, %38 : vector<16x128xf32>
    %42 = arith.maximumf %38, %41 : vector<16x128xf32>
    %cst_26 = arith.constant 0.000000e+00 : f32
    %43 = vector.broadcast %cst_26 : f32 to vector<16x128xf32>
    %44 = arith.maximumf %39, %43 : vector<16x128xf32>
    %45 = arith.addf %42, %44 : vector<16x128xf32>
    %c0_27 = arith.constant 0 : index
    %c0_28 = arith.constant 0 : index
    %46 = vector.load %arg5[%c0_27, %c0_28] : memref<136x128xf32, #tpu.memory_space<vmem>>, vector<128x128xf32>
    %c128 = arith.constant 128 : index
    %c0_29 = arith.constant 0 : index
    %47 = vector.load %arg5[%c128, %c0_29] : memref<136x128xf32, #tpu.memory_space<vmem>>, vector<1x128xf32>
    %cst_30 = arith.constant dense<0.000000e+00> : vector<16x128xf32>
    %48 = tpu.matmul %45, %46, %cst_30 {dimension_numbers = #tpu.dot_dimension_numbers<[1], [0], [0], [1], [0, 0, 1, 1], [], []>} : vector<16x128xf32>, vector<128x128xf32>, vector<16x128xf32> -> vector<16x128xf32>
    %49 = vector.broadcast %47 : vector<1x128xf32> to vector<16x128xf32>
    %50 = arith.addf %48, %49 : vector<16x128xf32>
    %cst_31 = arith.constant dense<0xFF800000> : vector<16xf32>
    %51 = vector.multi_reduction <maximumf>, %50, %cst_31 [1] : vector<16x128xf32> to vector<16xf32>
    %52 = vector.shape_cast %51 : vector<16xf32> to vector<16x1xf32>
    %53 = vector.broadcast %52 : vector<16x1xf32> to vector<16x128xf32>
    %54 = arith.subf %50, %53 : vector<16x128xf32>
    %55 = math.exp %54 : vector<16x128xf32>
    %cst_32 = arith.constant dense<0.000000e+00> : vector<16xf32>
    %56 = vector.multi_reduction <add>, %55, %cst_32 [1] : vector<16x128xf32> to vector<16xf32>
    %57 = vector.shape_cast %56 : vector<16xf32> to vector<16x1xf32>
    %58 = math.log %57 : vector<16x1xf32>
    %59 = vector.broadcast %58 : vector<16x1xf32> to vector<16x128xf32>
    %60 = arith.subf %54, %59 : vector<16x128xf32>
    %c0_33 = arith.constant 0 : index
    %c0_34 = arith.constant 0 : index
    %c0_35 = arith.constant 0 : index
    %61 = vector.load %arg6[%c0_33, %c0_34, %c0_35] : memref<1x16x128xf32, #tpu.memory_space<vmem>>, vector<1x16x128xf32>
    %62 = vector.shape_cast %61 : vector<1x16x128xf32> to vector<16x128xf32>
    %63 = vector.shape_cast %60 : vector<16x128xf32> to vector<1x16x128xf32>
    tpu.vector_store %arg6[%c0_33, %c0_34, %c0_35], %63 {strides = array<i32>} : memref<1x16x128xf32, #tpu.memory_space<vmem>>, vector<1x16x128xf32>,
    return
  }
  func.func @transform_0(%arg0: i32) -> (i32, i32, i32) {
    %c0_i32 = arith.constant 0 : i32
    %c0_i32_0 = arith.constant 0 : i32
    %c0_i32_1 = arith.constant 0 : i32
    return %arg0, %c0_i32, %c0_i32_0 : i32, i32, i32
  }
  func.func @transform_1(%arg0: i32) -> (i32, i32, i32) {
    %c0_i32 = arith.constant 0 : i32
    %c0_i32_0 = arith.constant 0 : i32
    %c0_i32_1 = arith.constant 0 : i32
    return %arg0, %c0_i32, %c0_i32_0 : i32, i32, i32
  }
  func.func @transform_2(%arg0: i32) -> (i32, i32) {
    %c0_i32 = arith.constant 0 : i32
    %c0_i32_0 = arith.constant 0 : i32
    %c0_i32_1 = arith.constant 0 : i32
    return %c0_i32, %c0_i32_0 : i32, i32
  }
  func.func @transform_3(%arg0: i32) -> (i32, i32) {
    %c0_i32 = arith.constant 0 : i32
    %c0_i32_0 = arith.constant 0 : i32
    %c0_i32_1 = arith.constant 0 : i32
    return %c0_i32, %c0_i32_0 : i32, i32
  }
  func.func @transform_4(%arg0: i32) -> (i32, i32) {
    %c0_i32 = arith.constant 0 : i32
    %c0_i32_0 = arith.constant 0 : i32
    %c0_i32_1 = arith.constant 0 : i32
    return %c0_i32, %c0_i32_0 : i32, i32
  }
  func.func @transform_5(%arg0: i32) -> (i32, i32, i32) {
    %c0_i32 = arith.constant 0 : i32
    %c0_i32_0 = arith.constant 0 : i32
    %c0_i32_1 = arith.constant 0 : i32
    return %arg0, %c0_i32, %c0_i32_0 : i32, i32, i32
  }
}

</mosaic_0001>

<llo_original>
// kernel: tpu_custom_call.1
$region0: #{tpu_custom_call.1}
  #allocation0 [shape = 'u32[]', space=smem, size = 0x4, offset = 0x4, fixed_abs, tag = 'smem constant byte address 0x4 - core index']
  #allocation1 [shape = 'u32[144,128]{1,0:T(1,128)}', space=vmem, size = 0x12000, scoped, tag = 'internal scratch']
  %s0 = inlined_call_operand.hbm [shape: f32[4,16,128], index: 0, kind: input, shape index: {}]
  %s1 = inlined_call_operand.hbm [shape: f32[4,16,16], index: 1, kind: input, shape index: {}]
  %s2 = inlined_call_operand.hbm [shape: f32[784,256], index: 2, kind: input, shape index: {}]
  %s3 = inlined_call_operand.hbm [shape: f32[784,256], index: 3, kind: input, shape index: {}]
  %s4 = inlined_call_operand.hbm [shape: f32[136,128], index: 4, kind: input, shape index: {}]
  %s5 = inlined_call_operand.hbm [shape: f32[4,16,128], index: 5, kind: output, shape index: {}]
  %s6 = sld [smem:[#allocation0]]
  $region73: #{tpu_custom_call.1} parent=0
    _
  %s8 = ssub.s32 1, %s6
  %s9 = scalar_select 0, %s8, %s6
  $region1: #{tpu_custom_call.1} parent=0
    #allocation2 [shape = 'u8[16384]{0}', space=vmem, size = 0x4000, scoped, tag = 'input window, operand 0']
    #allocation3 [shape = 's32[2]{0}', space=sflag, size = 0x8, scoped, tag = 'scoped memory for tpu_custom_call.1']
    #allocation4 [shape = 's32[2]{0}', space=sflag, size = 0x8, scoped, tag = 'scoped memory for tpu_custom_call.1']
    #allocation5 [shape = 'u8[16384]{0}', space=vmem, size = 0x4000, scoped, tag = 'input window, operand 1']
    #allocation6 [shape = 's32[2]{0}', space=sflag, size = 0x8, scoped, tag = 'scoped memory for tpu_custom_call.1']
    #allocation7 [shape = 'u8[802816]{0}', space=vmem, size = 0xc4000, scoped, tag = 'input window, operand 2, single buffered']
    #allocation8 [shape = 'u8[802816]{0}', space=vmem, size = 0xc4000, scoped, tag = 'input window, operand 3, single buffered']
    #allocation9 [shape = 's32[1]{0}', space=sflag, size = 0x4, scoped, tag = 'scoped memory for tpu_custom_call.1']
    #allocation10 [shape = 'u8[69632]{0}', space=vmem, size = 0x11000, scoped, tag = 'input window, operand 4, single buffered']
    #allocation11 [shape = 'u8[16384]{0}', space=vmem, size = 0x4000, scoped, tag = 'output window, operand 0']
    %10 = vsyncpa [#allocation3], 0
    %s11 = scalar_lea.sflag [#allocation3], 1
    %12 = vsyncpa %s11, 0
    %13 = vsyncpa [#allocation6], 0
    %s14 = scalar_lea.sflag [#allocation6], 1
    %15 = vsyncpa %s14, 0
    %16 = vsyncpa [#allocation9], 0
    %17 = vsyncpa [#allocation4], 0
    %s18 = scalar_lea.sflag [#allocation4], 1
    %19 = vsyncpa %s18, 0
    loop: start=0, step=1, limit=6
    $region2: #{tpu_custom_call.1} parent=1 // loop_pre_header
      _
    $region3: #{tpu_custom_call.1} parent=1 // loop_header
      %s21 = sphi 0, %s25
      %p22 = scmp.ge.s32.totalorder %s21, 6
      %s31 = sphi 0, %s33
      %s34 = sphi 0, %s31
      %s35 = sphi 0, %s34
      %s51 = sphi 0, %s35
      %s57 = sphi 0, %s59
      %s60 = sphi 0, %s57
      %s61 = sphi 0, %s60
      %s77 = sphi 0, %s61
      %s81 = sphi 0, %s81
      %s83 = sphi 0, %s81
      %s84 = sphi 0, %s83
      %s98 = sphi 0, %s84
      %s102 = sphi 0, %s102
      %s104 = sphi 0, %s102
      %s105 = sphi 0, %s104
      %s119 = sphi 0, %s105
      %s123 = sphi 0, %s123
      %s125 = sphi 0, %s123
      %s126 = sphi 0, %s125
      %s140 = sphi 0, %s126
      %s146 = sphi 0, %s148
      %s149 = sphi 0, %s146
      %s150 = sphi 0, %s149
      %s166 = sphi 0, %s150
    $region4: #{tpu_custom_call.1} parent=1 // loop_header_branch
      %24 = sbr.rel (%p22) target = $region8
    $region5: #{tpu_custom_call.1} parent=1 // loop_body
      %s26 = ssub.s32 %s21, 1
      %s27 = ssub.s32 %s21, 2
      %s28 = sadd.s32 %s21, 1
      %s29 = ssub.s32 %s21, %s28
      %p30 = scmp.eq.s32.totalorder %s29, 0
      %s32 = sadd.s32 %s31, 1
      %s33 = scalar_select %p30, %s31, %s32
      %p36 = pneg %p30
      %p37 = scmp.eq.s32.totalorder %s21, 3
      %p38 = por %p36, %p37
      %p39 = scmp.ne.s32.totalorder %s31, %s34
      %p40 = scmp.eq.s32.totalorder %s21, 0
      %p41 = por %p39, %p40
      %p42 = scmp.ne.s32.totalorder %s31, %s34
      %p43 = scmp.eq.s32.totalorder %s26, 3
      %p44 = por %p42, %p43
      %p45 = scmp.ne.s32.totalorder %s34, %s35
      %p46 = scmp.eq.s32.totalorder %s26, 0
      %p47 = por %p45, %p46
      %p48 = scmp.ne.s32.totalorder %s34, %s35
      %p49 = scmp.eq.s32.totalorder %s27, 3
      %p50 = por %p48, %p49
      %p52 = scmp.ne.s32.totalorder %s35, %s51
      %p53 = scmp.eq.s32.totalorder %s27, 0
      %p54 = por %p52, %p53
      %s55 = ssub.s32 %s21, %s28
      %p56 = scmp.eq.s32.totalorder %s55, 0
      %s58 = sadd.s32 %s57, 1
      %s59 = scalar_select %p56, %s57, %s58
      %p62 = pneg %p56
      %p63 = scmp.eq.s32.totalorder %s21, 3
      %p64 = por %p62, %p63
      %p65 = scmp.ne.s32.totalorder %s57, %s60
      %p66 = scmp.eq.s32.totalorder %s21, 0
      %p67 = por %p65, %p66
      %p68 = scmp.ne.s32.totalorder %s57, %s60
      %p69 = scmp.eq.s32.totalorder %s26, 3
      %p70 = por %p68, %p69
      %p71 = scmp.ne.s32.totalorder %s60, %s61
      %p72 = scmp.eq.s32.totalorder %s26, 0
      %p73 = por %p71, %p72
      %p74 = scmp.ne.s32.totalorder %s60, %s61
      %p75 = scmp.eq.s32.totalorder %s27, 3
      %p76 = por %p74, %p75
      %p78 = scmp.ne.s32.totalorder %s61, %s77
      %p79 = scmp.eq.s32.totalorder %s27, 0
      %p80 = por %p78, %p79
      %s82 = sadd.s32 %s81, 1
      %p85 = scmp.eq.s32.totalorder %s21, 3
      %p86 = scmp.ne.s32.totalorder %s81, %s83
      %p87 = scmp.eq.s32.totalorder %s21, 0
      %p88 = por %p86, %p87
      %p89 = scmp.ne.s32.totalorder %s81, %s83
      %p90 = scmp.eq.s32.totalorder %s26, 3
      %p91 = por %p89, %p90
      %p92 = scmp.ne.s32.totalorder %s83, %s84
      %p93 = scmp.eq.s32.totalorder %s26, 0
      %p94 = por %p92, %p93
      %p95 = scmp.ne.s32.totalorder %s83, %s84
      %p96 = scmp.eq.s32.totalorder %s27, 3
      %p97 = por %p95, %p96
      %p99 = scmp.ne.s32.totalorder %s84, %s98
      %p100 = scmp.eq.s32.totalorder %s27, 0
      %p101 = por %p99, %p100
      %s103 = sadd.s32 %s102, 1
      %p106 = scmp.eq.s32.totalorder %s21, 3
      %p107 = scmp.ne.s32.totalorder %s102, %s104
      %p108 = scmp.eq.s32.totalorder %s21, 0
      %p109 = por %p107, %p108
      %p110 = scmp.ne.s32.totalorder %s102, %s104
      %p111 = scmp.eq.s32.totalorder %s26, 3
      %p112 = por %p110, %p111
      %p113 = scmp.ne.s32.totalorder %s104, %s105
      %p114 = scmp.eq.s32.totalorder %s26, 0
      %p115 = por %p113, %p114
      %p116 = scmp.ne.s32.totalorder %s104, %s105
      %p117 = scmp.eq.s32.totalorder %s27, 3
      %p118 = por %p116, %p117
      %p120 = scmp.ne.s32.totalorder %s105, %s119
      %p121 = scmp.eq.s32.totalorder %s27, 0
      %p122 = por %p120, %p121
      %s124 = sadd.s32 %s123, 1
      %p127 = scmp.eq.s32.totalorder %s21, 3
      %p128 = scmp.ne.s32.totalorder %s123, %s125
      %p129 = scmp.eq.s32.totalorder %s21, 0
      %p130 = por %p128, %p129
      %p131 = scmp.ne.s32.totalorder %s123, %s125
      %p132 = scmp.eq.s32.totalorder %s26, 3
      %p133 = por %p131, %p132
      %p134 = scmp.ne.s32.totalorder %s125, %s126
      %p135 = scmp.eq.s32.totalorder %s26, 0
      %p136 = por %p134, %p135
      %p137 = scmp.ne.s32.totalorder %s125, %s126
      %p138 = scmp.eq.s32.totalorder %s27, 3
      %p139 = por %p137, %p138
      %p141 = scmp.ne.s32.totalorder %s126, %s140
      %p142 = scmp.eq.s32.totalorder %s27, 0
      %p143 = por %p141, %p142
      %s144 = ssub.s32 %s21, %s28
      %p145 = scmp.eq.s32.totalorder %s144, 0
      %s147 = sadd.s32 %s146, 1
      %s148 = scalar_select %p145, %s146, %s147
      %p151 = pneg %p145
      %p152 = scmp.eq.s32.totalorder %s21, 3
      %p153 = por %p151, %p152
      %p154 = scmp.ne.s32.totalorder %s146, %s149
      %p155 = scmp.eq.s32.totalorder %s21, 0
      %p156 = por %p154, %p155
      %p157 = scmp.ne.s32.totalorder %s146, %s149
      %p158 = scmp.eq.s32.totalorder %s26, 3
      %p159 = por %p157, %p158
      %p160 = scmp.ne.s32.totalorder %s149, %s150
      %p161 = scmp.eq.s32.totalorder %s26, 0
      %p162 = por %p160, %p161
      %p163 = scmp.ne.s32.totalorder %s149, %s150
      %p164 = scmp.eq.s32.totalorder %s27, 3
      %p165 = por %p163, %p164
      %p167 = scmp.ne.s32.totalorder %s150, %s166
      %p168 = scmp.eq.s32.totalorder %s27, 0
      %p169 = por %p167, %p168
      %p170 = scmp.le.s32.totalorder 1, %s21
      %p171 = scmp.lt.s32.totalorder %s21, 5
      %p172 = pnand %p170, %p171
      %p173 = pneg %p172
      // Predicated region
      $region9: #{tpu_custom_call.1} parent=5 // pred_check
        _
      $region10: #{tpu_custom_call.1} parent=5 // pred_check_branch
        %175 = sbr.rel (%p172) target = $region12
      $region11: #{tpu_custom_call.1} parent=5 // pred_region
        %s176 = ssub.s32 %s21, 1
        // Predicated region
        $region13: #{tpu_custom_call.1} parent=11 // pred_check
          %p177 = pneg %p94
        $region14: #{tpu_custom_call.1} parent=11 // pred_check_branch
          %179 = sbr.rel (%p177) target = $region16
        $region15: #{tpu_custom_call.1} parent=11 // pred_region
          %s181 = ssub.s32 25088, 25088
          %182 = vsyncadd [#allocation6], %s181
          %s183 = sshll.u32 [#allocation7], 4
          %s184 = int_to_ptr.vmem [resolvable:$true] %s183
          %189 = dma.hbm_to_vmem [thread:$0]  %s2, 25088, %s184, [#allocation6], 256, 256, 16
        $region16: #{tpu_custom_call.1} parent=11 // pred_fallthru
          _
        // Predicated region
        $region17: #{tpu_custom_call.1} parent=11 // pred_check
          %p190 = pneg %p115
        $region18: #{tpu_custom_call.1} parent=11 // pred_check_branch
          %192 = sbr.rel (%p190) target = $region20
        $region19: #{tpu_custom_call.1} parent=11 // pred_region
          %s194 = ssub.s32 25088, 25088
          %195 = vsyncadd [#allocation9], %s194
          %s196 = sshll.u32 [#allocation8], 4
          %s197 = int_to_ptr.vmem [resolvable:$true] %s196
          %202 = dma.hbm_to_vmem [thread:$0]  %s3, 25088, %s197, [#allocation9], 256, 256, 16
        $region20: #{tpu_custom_call.1} parent=11 // pred_fallthru
          _
        // Predicated region
        $region21: #{tpu_custom_call.1} parent=11 // pred_check
          %p203 = pneg %p136
        $region22: #{tpu_custom_call.1} parent=11 // pred_check_branch
          %205 = sbr.rel (%p203) target = $region24
        $region23: #{tpu_custom_call.1} parent=11 // pred_region
          %s207 = ssub.s32 2176, 2176
          %208 = vsyncadd [#allocation9], %s207
          %s209 = sshll.u32 [#allocation10], 4
          %s210 = int_to_ptr.vmem [resolvable:$true] %s209
          %215 = dma.hbm_to_vmem [thread:$0]  %s4, 2176, %s210, [#allocation9], 128, 128, 8
        $region24: #{tpu_custom_call.1} parent=11 // pred_fallthru
          _
      $region12: #{tpu_custom_call.1} parent=5 // pred_fallthru
        _
      %p216 = scmp.lt.s32.totalorder %s21, 4
      // Predicated region
      $region25: #{tpu_custom_call.1} parent=5 // pred_check
        %p217 = pneg %p216
      $region26: #{tpu_custom_call.1} parent=5 // pred_check_branch
        %219 = sbr.rel (%p217) target = $region28
      $region27: #{tpu_custom_call.1} parent=5 // pred_region
        // Predicated region
        $region29: #{tpu_custom_call.1} parent=27 // pred_check
          %p220 = pneg %p41
        $region30: #{tpu_custom_call.1} parent=27 // pred_check_branch
          %222 = sbr.rel (%p220) target = $region32
        $region31: #{tpu_custom_call.1} parent=27 // pred_region
          %s223 = sand.u32 %s31, 1
          %s224 = scalar_lea.sflag [#allocation3], %s223
          %s225 = sand.u32 %s31, 1
          %s226 = smul.addr %s225, 16
          %s227 = scalar_lea.vmem [#allocation2], %s226
          %s229 = ssub.s32 256, 256
          %230 = vsyncadd %s224, %s229
          %s231 = smul.addr %s21, 2
          %s232 = smul.addr %s231, 128
          %s233 = scalar_lea.hbm %s0, %s232
          %s234 = sshll.u32 %s227, 4
          %s235 = int_to_ptr.vmem [resolvable:$true] %s234
          %240 = dma.hbm_to_vmem [thread:$0]  %s233, 256, %s235, %s224, 128, 128, 8
        $region32: #{tpu_custom_call.1} parent=27 // pred_fallthru
          _
        // Predicated region
        $region33: #{tpu_custom_call.1} parent=27 // pred_check
          %p241 = pneg %p67
        $region34: #{tpu_custom_call.1} parent=27 // pred_check_branch
          %243 = sbr.rel (%p241) target = $region36
        $region35: #{tpu_custom_call.1} parent=27 // pred_region
          %s244 = sand.u32 %s21, 1
          %s245 = scalar_lea.sflag [#allocation6], %s244
          %s246 = sand.u32 %s57, 1
          %s247 = smul.addr %s246, 16
          %s248 = scalar_lea.vmem [#allocation5], %s247
          %s250 = ssub.s32 256, 256
          %251 = vsyncadd %s245, %s250
          %s252 = smul.addr %s21, 2
          %s253 = smul.addr %s252, 128
          %s254 = scalar_lea.hbm %s1, %s253
          %s255 = sshll.u32 %s248, 4
          %s256 = int_to_ptr.vmem [resolvable:$true] %s255
          %261 = dma.hbm_to_vmem [thread:$0]  %s254, 256, %s256, %s245, 128, 128, 8
        $region36: #{tpu_custom_call.1} parent=27 // pred_fallthru
          _
      $region28: #{tpu_custom_call.1} parent=5 // pred_fallthru
        _
      %p262 = scmp.le.s32.totalorder 1, %s21
      %p263 = scmp.lt.s32.totalorder %s21, 5
      %p264 = pnand %p262, %p263
      %p265 = pneg %p264
      // Predicated region
      $region37: #{tpu_custom_call.1} parent=5 // pred_check
        _
      $region38: #{tpu_custom_call.1} parent=5 // pred_check_branch
        %267 = sbr.rel (%p264) target = $region40
      $region39: #{tpu_custom_call.1} parent=5 // pred_region
        %s268 = ssub.s32 %s21, 1
        %s269 = sand.u32 %s34, 1
        %s270 = scalar_lea.sflag [#allocation3], %s269
        %s271 = sand.u32 %s34, 1
        %s272 = smul.addr %s271, 16
        %s273 = scalar_lea.vmem [#allocation2], %s272
        // Predicated region
        $region41: #{tpu_custom_call.1} parent=39 // pred_check
          %p274 = pneg %p47
        $region42: #{tpu_custom_call.1} parent=39 // pred_check_branch
          %276 = sbr.rel (%p274) target = $region44
        $region43: #{tpu_custom_call.1} parent=39 // pred_region
          %277 = dma.done %s270, 256
        $region44: #{tpu_custom_call.1} parent=39 // pred_fallthru
          _
        %s278 = sand.u32 %s26, 1
        %s279 = scalar_lea.sflag [#allocation6], %s278
        %s280 = sand.u32 %s60, 1
        %s281 = smul.addr %s280, 16
        %s282 = scalar_lea.vmem [#allocation5], %s281
        // Predicated region
        $region45: #{tpu_custom_call.1} parent=39 // pred_check
          %p283 = pneg %p73
        $region46: #{tpu_custom_call.1} parent=39 // pred_check_branch
          %285 = sbr.rel (%p283) target = $region48
        $region47: #{tpu_custom_call.1} parent=39 // pred_region
          %286 = dma.done %s279, 256
        $region48: #{tpu_custom_call.1} parent=39 // pred_fallthru
          _
        // Predicated region
        $region49: #{tpu_custom_call.1} parent=39 // pred_check
          %p287 = pneg %p94
        $region50: #{tpu_custom_call.1} parent=39 // pred_check_branch
          %289 = sbr.rel (%p287) target = $region52
        $region51: #{tpu_custom_call.1} parent=39 // pred_region
          %290 = dma.done [#allocation6], 25088
        $region52: #{tpu_custom_call.1} parent=39 // pred_fallthru
          _
        // Predicated region
        $region53: #{tpu_custom_call.1} parent=39 // pred_check
          %p291 = pneg %p115
        $region54: #{tpu_custom_call.1} parent=39 // pred_check_branch
          %293 = sbr.rel (%p291) target = $region56
        $region55: #{tpu_custom_call.1} parent=39 // pred_region
          %294 = dma.done [#allocation9], 25088
        $region56: #{tpu_custom_call.1} parent=39 // pred_fallthru
          _
        // Predicated region
        $region57: #{tpu_custom_call.1} parent=39 // pred_check
          %p295 = pneg %p136
        $region58: #{tpu_custom_call.1} parent=39 // pred_check_branch
          %297 = sbr.rel (%p295) target = $region60
        $region59: #{tpu_custom_call.1} parent=39 // pred_region
          %298 = dma.done [#allocation9], 2176
        $region60: #{tpu_custom_call.1} parent=39 // pred_fallthru
          _
        %s299 = sand.u32 %s34, 1
        %s300 = scalar_lea.sflag [#allocation3], %s299
        %s301 = sand.u32 %s34, 1
        %s302 = smul.addr %s301, 16
        %s303 = scalar_lea.vmem [#allocation2], %s302
        %p304 = pneg %p47
        %p305 = pneg %p44
        %s306 = sand.u32 %s26, 1
        %s307 = scalar_lea.sflag [#allocation6], %s306
        %s308 = sand.u32 %s60, 1
        %s309 = smul.addr %s308, 16
        %s310 = scalar_lea.vmem [#allocation5], %s309
        %p311 = pneg %p73
        %p312 = pneg %p70
        %p313 = pneg %p94
        %p314 = pneg %p91
        %p315 = pneg %p115
        %p316 = pneg %p112
        %p317 = pneg %p136
        %p318 = pneg %p133
        %p319 = pneg %p162
        %p320 = pneg %p159
        %s321 = sand.u32 %s149, 1
        %s322 = scalar_lea.sflag [#allocation4], %s321
        %s323 = sand.u32 %s149, 1
        %s324 = smul.addr %s323, 16
        %s325 = scalar_lea.vmem [#allocation11], %s324
        %v326 = vld [vmem:[%s282] sm:$0xff]
        %v327 = vld [vmem:[%s282 + $0x8] sm:$0xff]
        %v328 = vld [vmem:[%s273] sm:$0xff]
        %v329 = vld [vmem:[%s273 + $0x8] sm:$0xff]
        %v330 = vld [vmem:[#allocation7] sm:$0xff]
        %v331 = vld [vmem:[#allocation7 + $0x8] sm:$0xff]
        %v332 = vld [vmem:[#allocation7 + $0x10] sm:$0xff]
        %v333 = vld [vmem:[#allocation7 + $0x18] sm:$0xff]
        %v334 = vld [vmem:[#allocation7 + $0x20] sm:$0xff]
        %v335 = vld [vmem:[#allocation7 + $0x28] sm:$0xff]
        %v336 = vld [vmem:[#allocation7 + $0x30] sm:$0xff]
        %v337 = vld [vmem:[#allocation7 + $0x38] sm:$0xff]
        %v338 = vld [vmem:[#allocation7 + $0x40] sm:$0xff]
        %v339 = vld [vmem:[#allocation7 + $0x48] sm:$0xff]
        %v340 = vld [vmem:[#allocation7 + $0x50] sm:$0xff]
        %v341 = vld [vmem:[#allocation7 + $0x58] sm:$0xff]
        %v342 = vld [vmem:[#allocation7 + $0x60] sm:$0xff]
        %v343 = vld [vmem:[#allocation7 + $0x68] sm:$0xff]
        %v344 = vld [vmem:[#allocation7 + $0x70] sm:$0xff]
        %v345 = vld [vmem:[#allocation7 + $0x78] sm:$0xff]
        %v346 = vld [vmem:[#allocation7 + $0x80] sm:$0xff]
        %v347 = vld [vmem:[#allocation7 + $0x88] sm:$0xff]
        %v348 = vld [vmem:[#allocation7 + $0x90] sm:$0xff]
        %v349 = vld [vmem:[#allocation7 + $0x98] sm:$0xff]
        %v350 = vld [vmem:[#allocation7 + $0xa0] sm:$0xff]
        %v351 = vld [vmem:[#allocation7 + $0xa8] sm:$0xff]
        %v352 = vld [vmem:[#allocation7 + $0xb0] sm:$0xff]
        %v353 = vld [vmem:[#allocation7 + $0xb8] sm:$0xff]
        %v354 = vld [vmem:[#allocation7 + $0xc0] sm:$0xff]
        %v355 = vld [vmem:[#allocation7 + $0xc8] sm:$0xff]
        %v356 = vld [vmem:[#allocation7 + $0xd0] sm:$0xff]
        %v357 = vld [vmem:[#allocation7 + $0xd8] sm:$0xff]
        %v358 = vld [vmem:[#allocation7 + $0xe0] sm:$0xff]
        %v359 = vld [vmem:[#allocation7 + $0xe8] sm:$0xff]
        %v360 = vld [vmem:[#allocation7 + $0xf0] sm:$0xff]
        %v361 = vld [vmem:[#allocation7 + $0xf8] sm:$0xff]
        %v362 = vld [vmem:[#allocation7 + $0x100] sm:$0xff]
        %v363 = vld [vmem:[#allocation7 + $0x108] sm:$0xff]
        %v364 = vld [vmem:[#allocation7 + $0x110] sm:$0xff]
        %v365 = vld [vmem:[#allocation7 + $0x118] sm:$0xff]
        %v366 = vld [vmem:[#allocation7 + $0x120] sm:$0xff]
        %v367 = vld [vmem:[#allocation7 + $0x128] sm:$0xff]
        %v368 = vld [vmem:[#allocation7 + $0x130] sm:$0xff]
        %v369 = vld [vmem:[#allocation7 + $0x138] sm:$0xff]
        %v370 = vld [vmem:[#allocation7 + $0x140] sm:$0xff]
        %v371 = vld [vmem:[#allocation7 + $0x148] sm:$0xff]
        %v372 = vld [vmem:[#allocation7 + $0x150] sm:$0xff]
        %v373 = vld [vmem:[#allocation7 + $0x158] sm:$0xff]
        %v374 = vld [vmem:[#allocation7 + $0x160] sm:$0xff]
        %v375 = vld [vmem:[#allocation7 + $0x168] sm:$0xff]
        %v376 = vld [vmem:[#allocation7 + $0x170] sm:$0xff]
        %v377 = vld [vmem:[#allocation7 + $0x178] sm:$0xff]
        %v378 = vld [vmem:[#allocation7 + $0x180] sm:$0xff]
        %v379 = vld [vmem:[#allocation7 + $0x188] sm:$0xff]
        %v380 = vld [vmem:[#allocation7 + $0x190] sm:$0xff]
        %v381 = vld [vmem:[#allocation7 + $0x198] sm:$0xff]
        %v382 = vld [vmem:[#allocation7 + $0x1a0] sm:$0xff]
        %v383 = vld [vmem:[#allocation7 + $0x1a8] sm:$0xff]
        %v384 = vld [vmem:[#allocation7 + $0x1b0] sm:$0xff]
        %v385 = vld [vmem:[#allocation7 + $0x1b8] sm:$0xff]
        %v386 = vld [vmem:[#allocation7 + $0x1c0] sm:$0xff]
        %v387 = vld [vmem:[#allocation7 + $0x1c8] sm:$0xff]
        %v388 = vld [vmem:[#allocation7 + $0x1d0] sm:$0xff]
        %v389 = vld [vmem:[#allocation7 + $0x1d8] sm:$0xff]
        %v390 = vld [vmem:[#allocation7 + $0x1e0] sm:$0xff]
        %v391 = vld [vmem:[#allocation7 + $0x1e8] sm:$0xff]
        %v392 = vld [vmem:[#allocation7 + $0x1f0] sm:$0xff]
        %v393 = vld [vmem:[#allocation7 + $0x1f8] sm:$0xff]
        %v394 = vld [vmem:[#allocation7 + $0x200] sm:$0xff]
        %v395 = vld [vmem:[#allocation7 + $0x208] sm:$0xff]
        %v396 = vld [vmem:[#allocation7 + $0x210] sm:$0xff]
        %v397 = vld [vmem:[#allocation7 + $0x218] sm:$0xff]
        %v398 = vld [vmem:[#allocation7 + $0x220] sm:$0xff]
        %v399 = vld [vmem:[#allocation7 + $0x228] sm:$0xff]
        %v400 = vld [vmem:[#allocation7 + $0x230] sm:$0xff]
        %v401 = vld [vmem:[#allocation7 + $0x238] sm:$0xff]
        %v402 = vld [vmem:[#allocation7 + $0x240] sm:$0xff]
        %v403 = vld [vmem:[#allocation7 + $0x248] sm:$0xff]
        %v404 = vld [vmem:[#allocation7 + $0x250] sm:$0xff]
        %v405 = vld [vmem:[#allocation7 + $0x258] sm:$0xff]
        %v406 = vld [vmem:[#allocation7 + $0x260] sm:$0xff]
        %v407 = vld [vmem:[#allocation7 + $0x268] sm:$0xff]
        %v408 = vld [vmem:[#allocation7 + $0x270] sm:$0xff]
        %v409 = vld [vmem:[#allocation7 + $0x278] sm:$0xff]
        %v410 = vld [vmem:[#allocation7 + $0x280] sm:$0xff]
        %v411 = vld [vmem:[#allocation7 + $0x288] sm:$0xff]
        %v412 = vld [vmem:[#allocation7 + $0x290] sm:$0xff]
        %v413 = vld [vmem:[#allocation7 + $0x298] sm:$0xff]
        %v414 = vld [vmem:[#allocation7 + $0x2a0] sm:$0xff]
        %v415 = vld [vmem:[#allocation7 + $0x2a8] sm:$0xff]
        %v416 = vld [vmem:[#allocation7 + $0x2b0] sm:$0xff]
        %v417 = vld [vmem:[#allocation7 + $0x2b8] sm:$0xff]
        %v418 = vld [vmem:[#allocation7 + $0x2c0] sm:$0xff]
        %v419 = vld [vmem:[#allocation7 + $0x2c8] sm:$0xff]
        %v420 = vld [vmem:[#allocation7 + $0x2d0] sm:$0xff]
        %v421 = vld [vmem:[#allocation7 + $0x2d8] sm:$0xff]
        %v422 = vld [vmem:[#allocation7 + $0x2e0] sm:$0xff]
        %v423 = vld [vmem:[#allocation7 + $0x2e8] sm:$0xff]
        %v424 = vld [vmem:[#allocation7 + $0x2f0] sm:$0xff]
        %v425 = vld [vmem:[#allocation7 + $0x2f8] sm:$0xff]
        %v426 = vld [vmem:[#allocation7 + $0x300] sm:$0xff]
        %v427 = vld [vmem:[#allocation7 + $0x308] sm:$0xff]
        %v428 = vld [vmem:[#allocation7 + $0x310] sm:$0xff]
        %v429 = vld [vmem:[#allocation7 + $0x318] sm:$0xff]
        %v430 = vld [vmem:[#allocation7 + $0x320] sm:$0xff]
        %v431 = vld [vmem:[#allocation7 + $0x328] sm:$0xff]
        %v432 = vld [vmem:[#allocation7 + $0x330] sm:$0xff]
        %v433 = vld [vmem:[#allocation7 + $0x338] sm:$0xff]
        %v434 = vld [vmem:[#allocation7 + $0x340] sm:$0xff]
        %v435 = vld [vmem:[#allocation7 + $0x348] sm:$0xff]
        %v436 = vld [vmem:[#allocation7 + $0x350] sm:$0xff]
        %v437 = vld [vmem:[#allocation7 + $0x358] sm:$0xff]
        %v438 = vld [vmem:[#allocation7 + $0x360] sm:$0xff]
        %v439 = vld [vmem:[#allocation7 + $0x368] sm:$0xff]
        %v440 = vld [vmem:[#allocation7 + $0x370] sm:$0xff]
        %v441 = vld [vmem:[#allocation7 + $0x378] sm:$0xff]
        %v442 = vld [vmem:[#allocation7 + $0x380] sm:$0xff]
        %v443 = vld [vmem:[#allocation7 + $0x388] sm:$0xff]
        %v444 = vld [vmem:[#allocation7 + $0x390] sm:$0xff]
        %v445 = vld [vmem:[#allocation7 + $0x398] sm:$0xff]
        %v446 = vld [vmem:[#allocation7 + $0x3a0] sm:$0xff]
        %v447 = vld [vmem:[#allocation7 + $0x3a8] sm:$0xff]
        %v448 = vld [vmem:[#allocation7 + $0x3b0] sm:$0xff]
        %v449 = vld [vmem:[#allocation7 + $0x3b8] sm:$0xff]
        %v450 = vld [vmem:[#allocation7 + $0x3c0] sm:$0xff]
        %v451 = vld [vmem:[#allocation7 + $0x3c8] sm:$0xff]
        %v452 = vld [vmem:[#allocation7 + $0x3d0] sm:$0xff]
        %v453 = vld [vmem:[#allocation7 + $0x3d8] sm:$0xff]
        %v454 = vld [vmem:[#allocation7 + $0x3e0] sm:$0xff]
        %v455 = vld [vmem:[#allocation7 + $0x3e8] sm:$0xff]
        %v456 = vld [vmem:[#allocation7 + $0x3f0] sm:$0xff]
        %v457 = vld [vmem:[#allocation7 + $0x3f8] sm:$0xff]
        %v458 = vld [vmem:[#allocation7 + $0x400] sm:$0xff]
        %v459 = vld [vmem:[#allocation7 + $0x408] sm:$0xff]
        %v460 = vld [vmem:[#allocation7 + $0x410] sm:$0xff]
        %v461 = vld [vmem:[#allocation7 + $0x418] sm:$0xff]
        %v462 = vld [vmem:[#allocation7 + $0x420] sm:$0xff]
        %v463 = vld [vmem:[#allocation7 + $0x428] sm:$0xff]
        %v464 = vld [vmem:[#allocation7 + $0x430] sm:$0xff]
        %v465 = vld [vmem:[#allocation7 + $0x438] sm:$0xff]
        %v466 = vld [vmem:[#allocation7 + $0x440] sm:$0xff]
        %v467 = vld [vmem:[#allocation7 + $0x448] sm:$0xff]
        %v468 = vld [vmem:[#allocation7 + $0x450] sm:$0xff]
        %v469 = vld [vmem:[#allocation7 + $0x458] sm:$0xff]
        %v470 = vld [vmem:[#allocation7 + $0x460] sm:$0xff]
        %v471 = vld [vmem:[#allocation7 + $0x468] sm:$0xff]
        %v472 = vld [vmem:[#allocation7 + $0x470] sm:$0xff]
        %v473 = vld [vmem:[#allocation7 + $0x478] sm:$0xff]
        %v474 = vld [vmem:[#allocation7 + $0x480] sm:$0xff]
        %v475 = vld [vmem:[#allocation7 + $0x488] sm:$0xff]
        %v476 = vld [vmem:[#allocation7 + $0x490] sm:$0xff]
        %v477 = vld [vmem:[#allocation7 + $0x498] sm:$0xff]
        %v478 = vld [vmem:[#allocation7 + $0x4a0] sm:$0xff]
        %v479 = vld [vmem:[#allocation7 + $0x4a8] sm:$0xff]
        %v480 = vld [vmem:[#allocation7 + $0x4b0] sm:$0xff]
        %v481 = vld [vmem:[#allocation7 + $0x4b8] sm:$0xff]
        %v482 = vld [vmem:[#allocation7 + $0x4c0] sm:$0xff]
        %v483 = vld [vmem:[#allocation7 + $0x4c8] sm:$0xff]
        %v484 = vld [vmem:[#allocation7 + $0x4d0] sm:$0xff]
        %v485 = vld [vmem:[#allocation7 + $0x4d8] sm:$0xff]
        %v486 = vld [vmem:[#allocation7 + $0x4e0] sm:$0xff]
        %v487 = vld [vmem:[#allocation7 + $0x4e8] sm:$0xff]
        %v488 = vld [vmem:[#allocation7 + $0x4f0] sm:$0xff]
        %v489 = vld [vmem:[#allocation7 + $0x4f8] sm:$0xff]
        %v490 = vld [vmem:[#allocation7 + $0x500] sm:$0xff]
        %v491 = vld [vmem:[#allocation7 + $0x508] sm:$0xff]
        %v492 = vld [vmem:[#allocation7 + $0x510] sm:$0xff]
        %v493 = vld [vmem:[#allocation7 + $0x518] sm:$0xff]
        %v494 = vld [vmem:[#allocation7 + $0x520] sm:$0xff]
        %v495 = vld [vmem:[#allocation7 + $0x528] sm:$0xff]
        %v496 = vld [vmem:[#allocation7 + $0x530] sm:$0xff]
        %v497 = vld [vmem:[#allocation7 + $0x538] sm:$0xff]
        %v498 = vld [vmem:[#allocation7 + $0x540] sm:$0xff]
        %v499 = vld [vmem:[#allocation7 + $0x548] sm:$0xff]
        %v500 = vld [vmem:[#allocation7 + $0x550] sm:$0xff]
        %v501 = vld [vmem:[#allocation7 + $0x558] sm:$0xff]
        %v502 = vld [vmem:[#allocation7 + $0x560] sm:$0xff]
        %v503 = vld [vmem:[#allocation7 + $0x568] sm:$0xff]
        %v504 = vld [vmem:[#allocation7 + $0x570] sm:$0xff]
        %v505 = vld [vmem:[#allocation7 + $0x578] sm:$0xff]
        %v506 = vld [vmem:[#allocation7 + $0x580] sm:$0xff]
        %v507 = vld [vmem:[#allocation7 + $0x588] sm:$0xff]
        %v508 = vld [vmem:[#allocation7 + $0x590] sm:$0xff]
        %v509 = vld [vmem:[#allocation7 + $0x598] sm:$0xff]
        %v510 = vld [vmem:[#allocation7 + $0x5a0] sm:$0xff]
        %v511 = vld [vmem:[#allocation7 + $0x5a8] sm:$0xff]
        %v512 = vld [vmem:[#allocation7 + $0x5b0] sm:$0xff]
        %v513 = vld [vmem:[#allocation7 + $0x5b8] sm:$0xff]
        %v514 = vld [vmem:[#allocation7 + $0x5c0] sm:$0xff]
        %v515 = vld [vmem:[#allocation7 + $0x5c8] sm:$0xff]
        %v516 = vld [vmem:[#allocation7 + $0x5d0] sm:$0xff]
        %v517 = vld [vmem:[#allocation7 + $0x5d8] sm:$0xff]
        %v518 = vld [vmem:[#allocation7 + $0x5e0] sm:$0xff]
        %v519 = vld [vmem:[#allocation7 + $0x5e8] sm:$0xff]
        %v520 = vld [vmem:[#allocation7 + $0x5f0] sm:$0xff]
        %v521 = vld [vmem:[#allocation7 + $0x5f8] sm:$0xff]
        %s522 = scalar_lea.vmem [#allocation7], 1536
        %v523 = vld [vmem:[%s522] ss:$8 sm:$0x3]
        %s524 = scalar_lea.vmem [#allocation7], 1552
        %v525 = vld [vmem:[%s524] ss:$8 sm:$0x3]
        %v527 = vlaneseq
        %v528 = vshrl.u32 %v527, 7
        %v529 = vsub.s32 0, %v528
        %v530 = vrot.slane %v523, %v529
        %v531 = vlaneseq
        %v532 = vshrl.u32 %v531, 7
        %v533 = vsub.s32 1, %v532
        %v534 = vrot.slane %v523, %v533
        %537 = vmatprep.subr.mxu0 %v361
        %538 = vmatpush1.msra.mxu0 %v360
        %539 = vmatprep.subr.mxu0 %v359
        %540 = vmatpush1.msra.mxu0 %v358
        %541 = vmatprep.subr.mxu0 %v357
        %542 = vmatpush1.msra.mxu0 %v356
        %543 = vmatprep.subr.mxu0 %v355
        %544 = vmatpush1.msra.mxu0 %v354
        %545 = vmatprep.subr.mxu0 %v353
        %546 = vmatpush1.msra.mxu0 %v352
        %547 = vmatprep.subr.mxu0 %v351
        %548 = vmatpush1.msra.mxu0 %v350
        %549 = vmatprep.subr.mxu0 %v349
        %550 = vmatpush1.msra.mxu0 %v348
        %551 = vmatprep.subr.mxu0 %v347
        %552 = vmatpush1.msra.mxu0 %v346
        %553 = vmatprep.subr.mxu0 %v345
        %554 = vmatpush1.msra.mxu0 %v344
        %555 = vmatprep.subr.mxu0 %v343
        %556 = vmatpush1.msra.mxu0 %v342
        %557 = vmatprep.subr.mxu0 %v341
        %558 = vmatpush1.msra.mxu0 %v340
        %559 = vmatprep.subr.mxu0 %v339
        %560 = vmatpush1.msra.mxu0 %v338
        %561 = vmatprep.subr.mxu0 %v337
        %562 = vmatpush1.msra.mxu0 %v336
        %563 = vmatprep.subr.mxu0 %v335
        %564 = vmatpush1.msra.mxu0 %v334
        %565 = vmatprep.subr.mxu0 %v333
        %566 = vmatpush1.msra.mxu0 %v332
        %567 = vmatprep.subr.mxu0 %v331
        %568 = vmatpush1.msra.mxu0 %v330
        %569 = vmatprep.subr.mxu0 %v393
        %570 = vmatpush2.msra.mxu0 %v392
        %571 = vmatprep.subr.mxu0 %v391
        %572 = vmatpush2.msra.mxu0 %v390
        %573 = vmatprep.subr.mxu0 %v389
        %574 = vmatpush2.msra.mxu0 %v388
        %575 = vmatprep.subr.mxu0 %v387
        %576 = vmatpush2.msra.mxu0 %v386
        %577 = vmatprep.subr.mxu0 %v385
        %578 = vmatpush2.msra.mxu0 %v384
        %579 = vmatprep.subr.mxu0 %v383
        %580 = vmatpush2.msra.mxu0 %v382
        %581 = vmatprep.subr.mxu0 %v381
        %582 = vmatpush2.msra.mxu0 %v380
        %583 = vmatprep.subr.mxu0 %v379
        %584 = vmatpush2.msra.mxu0 %v378
        %585 = vmatprep.subr.mxu0 %v377
        %586 = vmatpush2.msra.mxu0 %v376
        %587 = vmatprep.subr.mxu0 %v375
        %588 = vmatpush2.msra.mxu0 %v374
        %589 = vmatprep.subr.mxu0 %v373
        %590 = vmatpush2.msra.mxu0 %v372
        %591 = vmatprep.subr.mxu0 %v371
        %592 = vmatpush2.msra.mxu0 %v370
        %593 = vmatprep.subr.mxu0 %v369
        %594 = vmatpush2.msra.mxu0 %v368
        %595 = vmatprep.subr.mxu0 %v367
        %596 = vmatpush2.msra.mxu0 %v366
        %597 = vmatprep.subr.mxu0 %v365
        %598 = vmatpush2.msra.mxu0 %v364
        %599 = vmatprep.subr.mxu0 %v363
        %600 = vmatpush2.msra.mxu0 %v362
        %601 = vmatprep.mubr.f32.mxu0 %v328
        %602 = vmatmul.mubr.f32.gmra.mxu0 %v328
        %v603 = vpop.f32.mrf.mxu0
        %v604 = vadd.f32 %v530, %v603
        %v605 = vpop.f32.mrf.mxu0
        %v606 = vadd.f32 %v534, %v605
        %607 = vmatprep.mubr.f32.mxu0 %v329
        %608 = vmatmul.mubr.f32.gmra.mxu0 %v329
        %v609 = vpop.f32.mrf.mxu0
        %v610 = vadd.f32 %v530, %v609
        %v611 = vpop.f32.mrf.mxu0
        %v612 = vadd.f32 %v534, %v611
        %613 = vdwg.mxu0
        %vm614 = vcmask 130048
        %v616 = vsel %vm614, %v326, 0
        %v619 = vsel %vm614, %v327, 0
        %621 = vmatprep.subr.mxu0 0.0
        %622 = vmatpush1.msra.mxu0 0.0
        %623 = vmatprep.subr.mxu0 0.0
        %624 = vmatpush1.msra.mxu0 0.0
        %625 = vmatprep.subr.mxu0 0.0
        %626 = vmatpush1.msra.mxu0 0.0
        %627 = vmatprep.subr.mxu0 0.0
        %628 = vmatpush1.msra.mxu0 0.0
        %629 = vmatprep.subr.mxu0 0.0
        %630 = vmatpush1.msra.mxu0 0.0
        %631 = vmatprep.subr.mxu0 0.0
        %632 = vmatpush1.msra.mxu0 0.0
        %633 = vmatprep.subr.mxu0 0.0
        %634 = vmatpush1.msra.mxu0 0.0
        %635 = vmatprep.subr.mxu0 0.0
        %636 = vmatpush1.msra.mxu0 0.0
        %637 = vmatprep.subr.mxu0 0.0
        %638 = vmatpush1.msra.mxu0 0.0
        %639 = vmatprep.subr.mxu0 0.0
        %640 = vmatpush1.msra.mxu0 0.0
        %641 = vmatprep.subr.mxu0 0.0
        %642 = vmatpush1.msra.mxu0 0.0
        %643 = vmatprep.subr.mxu0 0.0
        %644 = vmatpush1.msra.mxu0 0.0
        %645 = vmatprep.subr.mxu0 0.0
        %646 = vmatpush1.msra.mxu0 0.0
        %647 = vmatprep.subr.mxu0 0.0
        %648 = vmatpush1.msra.mxu0 0.0
        %649 = vmatprep.subr.mxu0 %v612
        %650 = vmatpush1.msra.mxu0 %v610
        %651 = vmatprep.subr.mxu0 %v606
        %652 = vmatpush1.msra.mxu0 %v604
        %653 = vmatprep.subr.mxu0 0.0
        %654 = vmatpush2.msra.mxu0 0.0
        %655 = vmatprep.subr.mxu0 0.0
        %656 = vmatpush2.msra.mxu0 0.0
        %657 = vmatprep.subr.mxu0 0.0
        %658 = vmatpush2.msra.mxu0 0.0
        %659 = vmatprep.subr.mxu0 0.0
        %660 = vmatpush2.msra.mxu0 0.0
        %661 = vmatprep.subr.mxu0 0.0
        %662 = vmatpush2.msra.mxu0 0.0
        %663 = vmatprep.subr.mxu0 0.0
        %664 = vmatpush2.msra.mxu0 0.0
        %665 = vmatprep.subr.mxu0 0.0
        %666 = vmatpush2.msra.mxu0 0.0
        %667 = vmatprep.subr.mxu0 0.0
        %668 = vmatpush2.msra.mxu0 0.0
        %669 = vmatprep.subr.mxu0 0.0
        %670 = vmatpush2.msra.mxu0 0.0
        %671 = vmatprep.subr.mxu0 0.0
        %672 = vmatpush2.msra.mxu0 0.0
        %673 = vmatprep.subr.mxu0 0.0
        %674 = vmatpush2.msra.mxu0 0.0
        %675 = vmatprep.subr.mxu0 0.0
        %676 = vmatpush2.msra.mxu0 0.0
        %677 = vmatprep.subr.mxu0 0.0
        %678 = vmatpush2.msra.mxu0 0.0
        %679 = vmatprep.subr.mxu0 0.0
        %680 = vmatpush2.msra.mxu0 0.0
        %681 = vmatprep.subr.mxu0 0.0
        %682 = vmatpush2.msra.mxu0 0.0
        %683 = vmatprep.subr.mxu0 0.0
        %684 = vmatpush2.msra.mxu0 0.0
        %685 = vmatprep.mubr.f32.mxu0 0.0
        %686 = vmatmul.mubr.f32.gmra.mxu0 %v616
        %v687 = vpop.f32.mrf.mxu0
        %v688 = vadd.f32 0.0, %v687
        %v689 = vpop.f32.mrf.mxu0
        %v690 = vadd.f32 0.0, %v689
        %691 = vmatprep.mubr.f32.mxu0 0.0
        %692 = vmatmul.mubr.f32.gmra.mxu0 %v619
        %v693 = vpop.f32.mrf.mxu0
        %v694 = vadd.f32 0.0, %v693
        %v695 = vpop.f32.mrf.mxu0
        %v696 = vadd.f32 0.0, %v695
        %697 = vdwg.mxu0
        %v699 = vlaneseq
        %v700 = vshrl.u32 %v699, 7
        %v701 = vsub.s32 0, %v700
        %v702 = vrot.slane %v525, %v701
        %v703 = vlaneseq
        %v704 = vshrl.u32 %v703, 7
        %v705 = vsub.s32 1, %v704
        %v706 = vrot.slane %v525, %v705
        %709 = vmatprep.subr.mxu0 %v425
        %710 = vmatpush1.msra.mxu0 %v424
        %711 = vmatprep.subr.mxu0 %v423
        %712 = vmatpush1.msra.mxu0 %v422
        %713 = vmatprep.subr.mxu0 %v421
        %714 = vmatpush1.msra.mxu0 %v420
        %715 = vmatprep.subr.mxu0 %v419
        %716 = vmatpush1.msra.mxu0 %v418
        %717 = vmatprep.subr.mxu0 %v417
        %718 = vmatpush1.msra.mxu0 %v416
        %719 = vmatprep.subr.mxu0 %v415
        %720 = vmatpush1.msra.mxu0 %v414
        %721 = vmatprep.subr.mxu0 %v413
        %722 = vmatpush1.msra.mxu0 %v412
        %723 = vmatprep.subr.mxu0 %v411
        %724 = vmatpush1.msra.mxu0 %v410
        %725 = vmatprep.subr.mxu0 %v409
        %726 = vmatpush1.msra.mxu0 %v408
        %727 = vmatprep.subr.mxu0 %v407
        %728 = vmatpush1.msra.mxu0 %v406
        %729 = vmatprep.subr.mxu0 %v405
        %730 = vmatpush1.msra.mxu0 %v404
        %731 = vmatprep.subr.mxu0 %v403
        %732 = vmatpush1.msra.mxu0 %v402
        %733 = vmatprep.subr.mxu0 %v401
        %734 = vmatpush1.msra.mxu0 %v400
        %735 = vmatprep.subr.mxu0 %v399
        %736 = vmatpush1.msra.mxu0 %v398
        %737 = vmatprep.subr.mxu0 %v397
        %738 = vmatpush1.msra.mxu0 %v396
        %739 = vmatprep.subr.mxu0 %v395
        %740 = vmatpush1.msra.mxu0 %v394
        %741 = vmatprep.subr.mxu0 %v457
        %742 = vmatpush2.msra.mxu0 %v456
        %743 = vmatprep.subr.mxu0 %v455
        %744 = vmatpush2.msra.mxu0 %v454
        %745 = vmatprep.subr.mxu0 %v453
        %746 = vmatpush2.msra.mxu0 %v452
        %747 = vmatprep.subr.mxu0 %v451
        %748 = vmatpush2.msra.mxu0 %v450
        %749 = vmatprep.subr.mxu0 %v449
        %750 = vmatpush2.msra.mxu0 %v448
        %751 = vmatprep.subr.mxu0 %v447
        %752 = vmatpush2.msra.mxu0 %v446
        %753 = vmatprep.subr.mxu0 %v445
        %754 = vmatpush2.msra.mxu0 %v444
        %755 = vmatprep.subr.mxu0 %v443
        %756 = vmatpush2.msra.mxu0 %v442
        %757 = vmatprep.subr.mxu0 %v441
        %758 = vmatpush2.msra.mxu0 %v440
        %759 = vmatprep.subr.mxu0 %v439
        %760 = vmatpush2.msra.mxu0 %v438
        %761 = vmatprep.subr.mxu0 %v437
        %762 = vmatpush2.msra.mxu0 %v436
        %763 = vmatprep.subr.mxu0 %v435
        %764 = vmatpush2.msra.mxu0 %v434
        %765 = vmatprep.subr.mxu0 %v433
        %766 = vmatpush2.msra.mxu0 %v432
        %767 = vmatprep.subr.mxu0 %v431
        %768 = vmatpush2.msra.mxu0 %v430
        %769 = vmatprep.subr.mxu0 %v429
        %770 = vmatpush2.msra.mxu0 %v428
        %771 = vmatprep.subr.mxu0 %v427
        %772 = vmatpush2.msra.mxu0 %v426
        %773 = vmatprep.mubr.f32.mxu0 %v606
        %774 = vmatmul.mubr.f32.gmra.mxu0 %v604
        %v775 = vpop.f32.mrf.mxu0
        %v776 = vadd.f32 %v702, %v775
        %v777 = vpop.f32.mrf.mxu0
        %v778 = vadd.f32 %v706, %v777
        %779 = vmatprep.mubr.f32.mxu0 %v612
        %780 = vmatmul.mubr.f32.gmra.mxu0 %v610
        %v781 = vpop.f32.mrf.mxu0
        %v782 = vadd.f32 %v702, %v781
        %v783 = vpop.f32.mrf.mxu0
        %v784 = vadd.f32 %v706, %v783
        %785 = vdwg.mxu0
        %786 = vmatprep.subr.mxu0 %v489
        %787 = vmatpush1.msra.mxu0 %v488
        %788 = vmatprep.subr.mxu0 %v487
        %789 = vmatpush1.msra.mxu0 %v486
        %790 = vmatprep.subr.mxu0 %v485
        %791 = vmatpush1.msra.mxu0 %v484
        %792 = vmatprep.subr.mxu0 %v483
        %793 = vmatpush1.msra.mxu0 %v482
        %794 = vmatprep.subr.mxu0 %v481
        %795 = vmatpush1.msra.mxu0 %v480
        %796 = vmatprep.subr.mxu0 %v479
        %797 = vmatpush1.msra.mxu0 %v478
        %798 = vmatprep.subr.mxu0 %v477
        %799 = vmatpush1.msra.mxu0 %v476
        %800 = vmatprep.subr.mxu0 %v475
        %801 = vmatpush1.msra.mxu0 %v474
        %802 = vmatprep.subr.mxu0 %v473
        %803 = vmatpush1.msra.mxu0 %v472
        %804 = vmatprep.subr.mxu0 %v471
        %805 = vmatpush1.msra.mxu0 %v470
        %806 = vmatprep.subr.mxu0 %v469
        %807 = vmatpush1.msra.mxu0 %v468
        %808 = vmatprep.subr.mxu0 %v467
        %809 = vmatpush1.msra.mxu0 %v466
        %810 = vmatprep.subr.mxu0 %v465
        %811 = vmatpush1.msra.mxu0 %v464
        %812 = vmatprep.subr.mxu0 %v463
        %813 = vmatpush1.msra.mxu0 %v462
        %814 = vmatprep.subr.mxu0 %v461
        %815 = vmatpush1.msra.mxu0 %v460
        %816 = vmatprep.subr.mxu0 %v459
        %817 = vmatpush1.msra.mxu0 %v458
        %818 = vmatprep.subr.mxu0 %v521
        %819 = vmatpush2.msra.mxu0 %v520
        %820 = vmatprep.subr.mxu0 %v519
        %821 = vmatpush2.msra.mxu0 %v518
        %822 = vmatprep.subr.mxu0 %v517
        %823 = vmatpush2.msra.mxu0 %v516
        %824 = vmatprep.subr.mxu0 %v515
        %825 = vmatpush2.msra.mxu0 %v514
        %826 = vmatprep.subr.mxu0 %v513
        %827 = vmatpush2.msra.mxu0 %v512
        %828 = vmatprep.subr.mxu0 %v511
        %829 = vmatpush2.msra.mxu0 %v510
        %830 = vmatprep.subr.mxu0 %v509
        %831 = vmatpush2.msra.mxu0 %v508
        %832 = vmatprep.subr.mxu0 %v507
        %833 = vmatpush2.msra.mxu0 %v506
        %834 = vmatprep.subr.mxu0 %v505
        %835 = vmatpush2.msra.mxu0 %v504
        %836 = vmatprep.subr.mxu0 %v503
        %837 = vmatpush2.msra.mxu0 %v502
        %838 = vmatprep.subr.mxu0 %v501
        %839 = vmatpush2.msra.mxu0 %v500
        %840 = vmatprep.subr.mxu0 %v499
        %841 = vmatpush2.msra.mxu0 %v498
        %842 = vmatprep.subr.mxu0 %v497
        %843 = vmatpush2.msra.mxu0 %v496
        %844 = vmatprep.subr.mxu0 %v495
        %845 = vmatpush2.msra.mxu0 %v494
        %846 = vmatprep.subr.mxu0 %v493
        %847 = vmatpush2.msra.mxu0 %v492
        %848 = vmatprep.subr.mxu0 %v491
        %849 = vmatpush2.msra.mxu0 %v490
        %850 = vmatprep.mubr.f32.mxu0 %v690
        %851 = vmatmul.mubr.f32.gmra.mxu0 %v688
        %v852 = vpop.f32.mrf.mxu0
        %v853 = vadd.f32 %v776, %v852
        %v854 = vpop.f32.mrf.mxu0
        %v855 = vadd.f32 %v778, %v854
        %856 = vmatprep.mubr.f32.mxu0 %v696
        %857 = vmatmul.mubr.f32.gmra.mxu0 %v694
        %v858 = vpop.f32.mrf.mxu0
        %v859 = vadd.f32 %v782, %v858
        %v860 = vpop.f32.mrf.mxu0
        %v861 = vadd.f32 %v784, %v860
        %862 = vdwg.mxu0
        %v863 = vmul.f32 %v853, 0.01
        %v864 = vmul.f32 %v859, 0.01
        %v865 = vmax.f32 %v853, %v863
        %v866 = vmax.f32 %v859, %v864
        %v867 = vmax.f32 %v855, 0.0
        %v868 = vmax.f32 %v861, 0.0
        %v869 = vadd.f32 %v865, %v867
        %v870 = vadd.f32 %v866, %v868
        %v871 = vld [vmem:[#allocation8] sm:$0xff]
        %v872 = vld [vmem:[#allocation8 + $0x8] sm:$0xff]
        %v873 = vld [vmem:[#allocation8 + $0x10] sm:$0xff]
        %v874 = vld [vmem:[#allocation8 + $0x18] sm:$0xff]
        %v875 = vld [vmem:[#allocation8 + $0x20] sm:$0xff]
        %v876 = vld [vmem:[#allocation8 + $0x28] sm:$0xff]
        %v877 = vld [vmem:[#allocation8 + $0x30] sm:$0xff]
        %v878 = vld [vmem:[#allocation8 + $0x38] sm:$0xff]
        %v879 = vld [vmem:[#allocation8 + $0x40] sm:$0xff]
        %v880 = vld [vmem:[#allocation8 + $0x48] sm:$0xff]
        %v881 = vld [vmem:[#allocation8 + $0x50] sm:$0xff]
        %v882 = vld [vmem:[#allocation8 + $0x58] sm:$0xff]
        %v883 = vld [vmem:[#allocation8 + $0x60] sm:$0xff]
        %v884 = vld [vmem:[#allocation8 + $0x68] sm:$0xff]
        %v885 = vld [vmem:[#allocation8 + $0x70] sm:$0xff]
        %v886 = vld [vmem:[#allocation8 + $0x78] sm:$0xff]
        %v887 = vld [vmem:[#allocation8 + $0x80] sm:$0xff]
        %v888 = vld [vmem:[#allocation8 + $0x88] sm:$0xff]
        %v889 = vld [vmem:[#allocation8 + $0x90] sm:$0xff]
        %v890 = vld [vmem:[#allocation8 + $0x98] sm:$0xff]
        %v891 = vld [vmem:[#allocation8 + $0xa0] sm:$0xff]
        %v892 = vld [vmem:[#allocation8 + $0xa8] sm:$0xff]
        %v893 = vld [vmem:[#allocation8 + $0xb0] sm:$0xff]
        %v894 = vld [vmem:[#allocation8 + $0xb8] sm:$0xff]
        %v895 = vld [vmem:[#allocation8 + $0xc0] sm:$0xff]
        %v896 = vld [vmem:[#allocation8 + $0xc8] sm:$0xff]
        %v897 = vld [vmem:[#allocation8 + $0xd0] sm:$0xff]
        %v898 = vld [vmem:[#allocation8 + $0xd8] sm:$0xff]
        %v899 = vld [vmem:[#allocation8 + $0xe0] sm:$0xff]
        %v900 = vld [vmem:[#allocation8 + $0xe8] sm:$0xff]
        %v901 = vld [vmem:[#allocation8 + $0xf0] sm:$0xff]
        %v902 = vld [vmem:[#allocation8 + $0xf8] sm:$0xff]
        %v903 = vld [vmem:[#allocation8 + $0x100] sm:$0xff]
        %v904 = vld [vmem:[#allocation8 + $0x108] sm:$0xff]
        %v905 = vld [vmem:[#allocation8 + $0x110] sm:$0xff]
        %v906 = vld [vmem:[#allocation8 + $0x118] sm:$0xff]
        %v907 = vld [vmem:[#allocation8 + $0x120] sm:$0xff]
        %v908 = vld [vmem:[#allocation8 + $0x128] sm:$0xff]
        %v909 = vld [vmem:[#allocation8 + $0x130] sm:$0xff]
        %v910 = vld [vmem:[#allocation8 + $0x138] sm:$0xff]
        %v911 = vld [vmem:[#allocation8 + $0x140] sm:$0xff]
        %v912 = vld [vmem:[#allocation8 + $0x148] sm:$0xff]
        %v913 = vld [vmem:[#allocation8 + $0x150] sm:$0xff]
        %v914 = vld [vmem:[#allocation8 + $0x158] sm:$0xff]
        %v915 = vld [vmem:[#allocation8 + $0x160] sm:$0xff]
        %v916 = vld [vmem:[#allocation8 + $0x168] sm:$0xff]
        %v917 = vld [vmem:[#allocation8 + $0x170] sm:$0xff]
        %v918 = vld [vmem:[#allocation8 + $0x178] sm:$0xff]
        %v919 = vld [vmem:[#allocation8 + $0x180] sm:$0xff]
        %v920 = vld [vmem:[#allocation8 + $0x188] sm:$0xff]
        %v921 = vld [vmem:[#allocation8 + $0x190] sm:$0xff]
        %v922 = vld [vmem:[#allocation8 + $0x198] sm:$0xff]
        %v923 = vld [vmem:[#allocation8 + $0x1a0] sm:$0xff]
        %v924 = vld [vmem:[#allocation8 + $0x1a8] sm:$0xff]
        %v925 = vld [vmem:[#allocation8 + $0x1b0] sm:$0xff]
        %v926 = vld [vmem:[#allocation8 + $0x1b8] sm:$0xff]
        %v927 = vld [vmem:[#allocation8 + $0x1c0] sm:$0xff]
        %v928 = vld [vmem:[#allocation8 + $0x1c8] sm:$0xff]
        %v929 = vld [vmem:[#allocation8 + $0x1d0] sm:$0xff]
        %v930 = vld [vmem:[#allocation8 + $0x1d8] sm:$0xff]
        %v931 = vld [vmem:[#allocation8 + $0x1e0] sm:$0xff]
        %v932 = vld [vmem:[#allocation8 + $0x1e8] sm:$0xff]
        %v933 = vld [vmem:[#allocation8 + $0x1f0] sm:$0xff]
        %v934 = vld [vmem:[#allocation8 + $0x1f8] sm:$0xff]
        %v935 = vld [vmem:[#allocation8 + $0x200] sm:$0xff]
        %v936 = vld [vmem:[#allocation8 + $0x208] sm:$0xff]
        %v937 = vld [vmem:[#allocation8 + $0x210] sm:$0xff]
        %v938 = vld [vmem:[#allocation8 + $0x218] sm:$0xff]
        %v939 = vld [vmem:[#allocation8 + $0x220] sm:$0xff]
        %v940 = vld [vmem:[#allocation8 + $0x228] sm:$0xff]
        %v941 = vld [vmem:[#allocation8 + $0x230] sm:$0xff]
        %v942 = vld [vmem:[#allocation8 + $0x238] sm:$0xff]
        %v943 = vld [vmem:[#allocation8 + $0x240] sm:$0xff]
        %v944 = vld [vmem:[#allocation8 + $0x248] sm:$0xff]
        %v945 = vld [vmem:[#allocation8 + $0x250] sm:$0xff]
        %v946 = vld [vmem:[#allocation8 + $0x258] sm:$0xff]
        %v947 = vld [vmem:[#allocation8 + $0x260] sm:$0xff]
        %v948 = vld [vmem:[#allocation8 + $0x268] sm:$0xff]
        %v949 = vld [vmem:[#allocation8 + $0x270] sm:$0xff]
        %v950 = vld [vmem:[#allocation8 + $0x278] sm:$0xff]
        %v951 = vld [vmem:[#allocation8 + $0x280] sm:$0xff]
        %v952 = vld [vmem:[#allocation8 + $0x288] sm:$0xff]
        %v953 = vld [vmem:[#allocation8 + $0x290] sm:$0xff]
        %v954 = vld [vmem:[#allocation8 + $0x298] sm:$0xff]
        %v955 = vld [vmem:[#allocation8 + $0x2a0] sm:$0xff]
        %v956 = vld [vmem:[#allocation8 + $0x2a8] sm:$0xff]
        %v957 = vld [vmem:[#allocation8 + $0x2b0] sm:$0xff]
        %v958 = vld [vmem:[#allocation8 + $0x2b8] sm:$0xff]
        %v959 = vld [vmem:[#allocation8 + $0x2c0] sm:$0xff]
        %v960 = vld [vmem:[#allocation8 + $0x2c8] sm:$0xff]
        %v961 = vld [vmem:[#allocation8 + $0x2d0] sm:$0xff]
        %v962 = vld [vmem:[#allocation8 + $0x2d8] sm:$0xff]
        %v963 = vld [vmem:[#allocation8 + $0x2e0] sm:$0xff]
        %v964 = vld [vmem:[#allocation8 + $0x2e8] sm:$0xff]
        %v965 = vld [vmem:[#allocation8 + $0x2f0] sm:$0xff]
        %v966 = vld [vmem:[#allocation8 + $0x2f8] sm:$0xff]
        %v967 = vld [vmem:[#allocation8 + $0x300] sm:$0xff]
        %v968 = vld [vmem:[#allocation8 + $0x308] sm:$0xff]
        %v969 = vld [vmem:[#allocation8 + $0x310] sm:$0xff]
        %v970 = vld [vmem:[#allocation8 + $0x318] sm:$0xff]
        %v971 = vld [vmem:[#allocation8 + $0x320] sm:$0xff]
        %v972 = vld [vmem:[#allocation8 + $0x328] sm:$0xff]
        %v973 = vld [vmem:[#allocation8 + $0x330] sm:$0xff]
        %v974 = vld [vmem:[#allocation8 + $0x338] sm:$0xff]
        %v975 = vld [vmem:[#allocation8 + $0x340] sm:$0xff]
        %v976 = vld [vmem:[#allocation8 + $0x348] sm:$0xff]
        %v977 = vld [vmem:[#allocation8 + $0x350] sm:$0xff]
        %v978 = vld [vmem:[#allocation8 + $0x358] sm:$0xff]
        %v979 = vld [vmem:[#allocation8 + $0x360] sm:$0xff]
        %v980 = vld [vmem:[#allocation8 + $0x368] sm:$0xff]
        %v981 = vld [vmem:[#allocation8 + $0x370] sm:$0xff]
        %v982 = vld [vmem:[#allocation8 + $0x378] sm:$0xff]
        %v983 = vld [vmem:[#allocation8 + $0x380] sm:$0xff]
        %v984 = vld [vmem:[#allocation8 + $0x388] sm:$0xff]
        %v985 = vld [vmem:[#allocation8 + $0x390] sm:$0xff]
        %v986 = vld [vmem:[#allocation8 + $0x398] sm:$0xff]
        %v987 = vld [vmem:[#allocation8 + $0x3a0] sm:$0xff]
        %v988 = vld [vmem:[#allocation8 + $0x3a8] sm:$0xff]
        %v989 = vld [vmem:[#allocation8 + $0x3b0] sm:$0xff]
        %v990 = vld [vmem:[#allocation8 + $0x3b8] sm:$0xff]
        %v991 = vld [vmem:[#allocation8 + $0x3c0] sm:$0xff]
        %v992 = vld [vmem:[#allocation8 + $0x3c8] sm:$0xff]
        %v993 = vld [vmem:[#allocation8 + $0x3d0] sm:$0xff]
        %v994 = vld [vmem:[#allocation8 + $0x3d8] sm:$0xff]
        %v995 = vld [vmem:[#allocation8 + $0x3e0] sm:$0xff]
        %v996 = vld [vmem:[#allocation8 + $0x3e8] sm:$0xff]
        %v997 = vld [vmem:[#allocation8 + $0x3f0] sm:$0xff]
        %v998 = vld [vmem:[#allocation8 + $0x3f8] sm:$0xff]
        %v999 = vld [vmem:[#allocation8 + $0x400] sm:$0xff]
        %v1000 = vld [vmem:[#allocation8 + $0x408] sm:$0xff]
        %v1001 = vld [vmem:[#allocation8 + $0x410] sm:$0xff]
        %v1002 = vld [vmem:[#allocation8 + $0x418] sm:$0xff]
        %v1003 = vld [vmem:[#allocation8 + $0x420] sm:$0xff]
        %v1004 = vld [vmem:[#allocation8 + $0x428] sm:$0xff]
        %v1005 = vld [vmem:[#allocation8 + $0x430] sm:$0xff]
        %v1006 = vld [vmem:[#allocation8 + $0x438] sm:$0xff]
        %v1007 = vld [vmem:[#allocation8 + $0x440] sm:$0xff]
        %v1008 = vld [vmem:[#allocation8 + $0x448] sm:$0xff]
        %v1009 = vld [vmem:[#allocation8 + $0x450] sm:$0xff]
        %v1010 = vld [vmem:[#allocation8 + $0x458] sm:$0xff]
        %v1011 = vld [vmem:[#allocation8 + $0x460] sm:$0xff]
        %v1012 = vld [vmem:[#allocation8 + $0x468] sm:$0xff]
        %v1013 = vld [vmem:[#allocation8 + $0x470] sm:$0xff]
        %v1014 = vld [vmem:[#allocation8 + $0x478] sm:$0xff]
        %v1015 = vld [vmem:[#allocation8 + $0x480] sm:$0xff]
        %v1016 = vld [vmem:[#allocation8 + $0x488] sm:$0xff]
        %v1017 = vld [vmem:[#allocation8 + $0x490] sm:$0xff]
        %v1018 = vld [vmem:[#allocation8 + $0x498] sm:$0xff]
        %v1019 = vld [vmem:[#allocation8 + $0x4a0] sm:$0xff]
        %v1020 = vld [vmem:[#allocation8 + $0x4a8] sm:$0xff]
        %v1021 = vld [vmem:[#allocation8 + $0x4b0] sm:$0xff]
        %v1022 = vld [vmem:[#allocation8 + $0x4b8] sm:$0xff]
        %v1023 = vld [vmem:[#allocation8 + $0x4c0] sm:$0xff]
        %v1024 = vld [vmem:[#allocation8 + $0x4c8] sm:$0xff]
        %v1025 = vld [vmem:[#allocation8 + $0x4d0] sm:$0xff]
        %v1026 = vld [vmem:[#allocation8 + $0x4d8] sm:$0xff]
        %v1027 = vld [vmem:[#allocation8 + $0x4e0] sm:$0xff]
        %v1028 = vld [vmem:[#allocation8 + $0x4e8] sm:$0xff]
        %v1029 = vld [vmem:[#allocation8 + $0x4f0] sm:$0xff]
        %v1030 = vld [vmem:[#allocation8 + $0x4f8] sm:$0xff]
        %v1031 = vld [vmem:[#allocation8 + $0x500] sm:$0xff]
        %v1032 = vld [vmem:[#allocation8 + $0x508] sm:$0xff]
        %v1033 = vld [vmem:[#allocation8 + $0x510] sm:$0xff]
        %v1034 = vld [vmem:[#allocation8 + $0x518] sm:$0xff]
        %v1035 = vld [vmem:[#allocation8 + $0x520] sm:$0xff]
        %v1036 = vld [vmem:[#allocation8 + $0x528] sm:$0xff]
        %v1037 = vld [vmem:[#allocation8 + $0x530] sm:$0xff]
        %v1038 = vld [vmem:[#allocation8 + $0x538] sm:$0xff]
        %v1039 = vld [vmem:[#allocation8 + $0x540] sm:$0xff]
        %v1040 = vld [vmem:[#allocation8 + $0x548] sm:$0xff]
        %v1041 = vld [vmem:[#allocation8 + $0x550] sm:$0xff]
        %v1042 = vld [vmem:[#allocation8 + $0x558] sm:$0xff]
        %v1043 = vld [vmem:[#allocation8 + $0x560] sm:$0xff]
        %v1044 = vld [vmem:[#allocation8 + $0x568] sm:$0xff]
        %v1045 = vld [vmem:[#allocation8 + $0x570] sm:$0xff]
        %v1046 = vld [vmem:[#allocation8 + $0x578] sm:$0xff]
        %v1047 = vld [vmem:[#allocation8 + $0x580] sm:$0xff]
        %v1048 = vld [vmem:[#allocation8 + $0x588] sm:$0xff]
        %v1049 = vld [vmem:[#allocation8 + $0x590] sm:$0xff]
        %v1050 = vld [vmem:[#allocation8 + $0x598] sm:$0xff]
        %v1051 = vld [vmem:[#allocation8 + $0x5a0] sm:$0xff]
        %v1052 = vld [vmem:[#allocation8 + $0x5a8] sm:$0xff]
        %v1053 = vld [vmem:[#allocation8 + $0x5b0] sm:$0xff]
        %v1054 = vld [vmem:[#allocation8 + $0x5b8] sm:$0xff]
        %v1055 = vld [vmem:[#allocation8 + $0x5c0] sm:$0xff]
        %v1056 = vld [vmem:[#allocation8 + $0x5c8] sm:$0xff]
        %v1057 = vld [vmem:[#allocation8 + $0x5d0] sm:$0xff]
        %v1058 = vld [vmem:[#allocation8 + $0x5d8] sm:$0xff]
        %v1059 = vld [vmem:[#allocation8 + $0x5e0] sm:$0xff]
        %v1060 = vld [vmem:[#allocation8 + $0x5e8] sm:$0xff]
        %v1061 = vld [vmem:[#allocation8 + $0x5f0] sm:$0xff]
        %v1062 = vld [vmem:[#allocation8 + $0x5f8] sm:$0xff]
        %s1063 = scalar_lea.vmem [#allocation8], 1536
        %v1064 = vld [vmem:[%s1063] ss:$8 sm:$0x3]
        %s1065 = scalar_lea.vmem [#allocation8], 1552
        %v1066 = vld [vmem:[%s1065] ss:$8 sm:$0x3]
        %v1068 = vlaneseq
        %v1069 = vshrl.u32 %v1068, 7
        %v1070 = vsub.s32 0, %v1069
        %v1071 = vrot.slane %v1064, %v1070
        %v1072 = vlaneseq
        %v1073 = vshrl.u32 %v1072, 7
        %v1074 = vsub.s32 1, %v1073
        %v1075 = vrot.slane %v1064, %v1074
        %1078 = vmatprep.subr.mxu0 %v902
        %1079 = vmatpush1.msra.mxu0 %v901
        %1080 = vmatprep.subr.mxu0 %v900
        %1081 = vmatpush1.msra.mxu0 %v899
        %1082 = vmatprep.subr.mxu0 %v898
        %1083 = vmatpush1.msra.mxu0 %v897
        %1084 = vmatprep.subr.mxu0 %v896
        %1085 = vmatpush1.msra.mxu0 %v895
        %1086 = vmatprep.subr.mxu0 %v894
        %1087 = vmatpush1.msra.mxu0 %v893
        %1088 = vmatprep.subr.mxu0 %v892
        %1089 = vmatpush1.msra.mxu0 %v891
        %1090 = vmatprep.subr.mxu0 %v890
        %1091 = vmatpush1.msra.mxu0 %v889
        %1092 = vmatprep.subr.mxu0 %v888
        %1093 = vmatpush1.msra.mxu0 %v887
        %1094 = vmatprep.subr.mxu0 %v886
        %1095 = vmatpush1.msra.mxu0 %v885
        %1096 = vmatprep.subr.mxu0 %v884
        %1097 = vmatpush1.msra.mxu0 %v883
        %1098 = vmatprep.subr.mxu0 %v882
        %1099 = vmatpush1.msra.mxu0 %v881
        %1100 = vmatprep.subr.mxu0 %v880
        %1101 = vmatpush1.msra.mxu0 %v879
        %1102 = vmatprep.subr.mxu0 %v878
        %1103 = vmatpush1.msra.mxu0 %v877
        %1104 = vmatprep.subr.mxu0 %v876
        %1105 = vmatpush1.msra.mxu0 %v875
        %1106 = vmatprep.subr.mxu0 %v874
        %1107 = vmatpush1.msra.mxu0 %v873
        %1108 = vmatprep.subr.mxu0 %v872
        %1109 = vmatpush1.msra.mxu0 %v871
        %1110 = vmatprep.subr.mxu0 %v934
        %1111 = vmatpush2.msra.mxu0 %v933
        %1112 = vmatprep.subr.mxu0 %v932
        %1113 = vmatpush2.msra.mxu0 %v931
        %1114 = vmatprep.subr.mxu0 %v930
        %1115 = vmatpush2.msra.mxu0 %v929
        %1116 = vmatprep.subr.mxu0 %v928
        %1117 = vmatpush2.msra.mxu0 %v927
        %1118 = vmatprep.subr.mxu0 %v926
        %1119 = vmatpush2.msra.mxu0 %v925
        %1120 = vmatprep.subr.mxu0 %v924
        %1121 = vmatpush2.msra.mxu0 %v923
        %1122 = vmatprep.subr.mxu0 %v922
        %1123 = vmatpush2.msra.mxu0 %v921
        %1124 = vmatprep.subr.mxu0 %v920
        %1125 = vmatpush2.msra.mxu0 %v919
        %1126 = vmatprep.subr.mxu0 %v918
        %1127 = vmatpush2.msra.mxu0 %v917
        %1128 = vmatprep.subr.mxu0 %v916
        %1129 = vmatpush2.msra.mxu0 %v915
        %1130 = vmatprep.subr.mxu0 %v914
        %1131 = vmatpush2.msra.mxu0 %v913
        %1132 = vmatprep.subr.mxu0 %v912
        %1133 = vmatpush2.msra.mxu0 %v911
        %1134 = vmatprep.subr.mxu0 %v910
        %1135 = vmatpush2.msra.mxu0 %v909
        %1136 = vmatprep.subr.mxu0 %v908
        %1137 = vmatpush2.msra.mxu0 %v907
        %1138 = vmatprep.subr.mxu0 %v906
        %1139 = vmatpush2.msra.mxu0 %v905
        %1140 = vmatprep.subr.mxu0 %v904
        %1141 = vmatpush2.msra.mxu0 %v903
        %1142 = vmatprep.mubr.f32.mxu0 %v869
        %1143 = vmatmul.mubr.f32.gmra.mxu0 %v328
        %v1144 = vpop.f32.mrf.mxu0
        %v1145 = vadd.f32 %v1071, %v1144
        %v1146 = vpop.f32.mrf.mxu0
        %v1147 = vadd.f32 %v1075, %v1146
        %1148 = vmatprep.mubr.f32.mxu0 %v870
        %1149 = vmatmul.mubr.f32.gmra.mxu0 %v329
        %v1150 = vpop.f32.mrf.mxu0
        %v1151 = vadd.f32 %v1071, %v1150
        %v1152 = vpop.f32.mrf.mxu0
        %v1153 = vadd.f32 %v1075, %v1152
        %1154 = vdwg.mxu0
        %1155 = vmatprep.subr.mxu0 0.0
        %1156 = vmatpush1.msra.mxu0 0.0
        %1157 = vmatprep.subr.mxu0 0.0
        %1158 = vmatpush1.msra.mxu0 0.0
        %1159 = vmatprep.subr.mxu0 0.0
        %1160 = vmatpush1.msra.mxu0 0.0
        %1161 = vmatprep.subr.mxu0 0.0
        %1162 = vmatpush1.msra.mxu0 0.0
        %1163 = vmatprep.subr.mxu0 0.0
        %1164 = vmatpush1.msra.mxu0 0.0
        %1165 = vmatprep.subr.mxu0 0.0
        %1166 = vmatpush1.msra.mxu0 0.0
        %1167 = vmatprep.subr.mxu0 0.0
        %1168 = vmatpush1.msra.mxu0 0.0
        %1169 = vmatprep.subr.mxu0 0.0
        %1170 = vmatpush1.msra.mxu0 0.0
        %1171 = vmatprep.subr.mxu0 0.0
        %1172 = vmatpush1.msra.mxu0 0.0
        %1173 = vmatprep.subr.mxu0 0.0
        %1174 = vmatpush1.msra.mxu0 0.0
        %1175 = vmatprep.subr.mxu0 0.0
        %1176 = vmatpush1.msra.mxu0 0.0
        %1177 = vmatprep.subr.mxu0 0.0
        %1178 = vmatpush1.msra.mxu0 0.0
        %1179 = vmatprep.subr.mxu0 0.0
        %1180 = vmatpush1.msra.mxu0 0.0
        %1181 = vmatprep.subr.mxu0 0.0
        %1182 = vmatpush1.msra.mxu0 0.0
        %1183 = vmatprep.subr.mxu0 %v1153
        %1184 = vmatpush1.msra.mxu0 %v1151
        %1185 = vmatprep.subr.mxu0 %v1147
        %1186 = vmatpush1.msra.mxu0 %v1145
        %1187 = vmatprep.subr.mxu0 0.0
        %1188 = vmatpush2.msra.mxu0 0.0
        %1189 = vmatprep.subr.mxu0 0.0
        %1190 = vmatpush2.msra.mxu0 0.0
        %1191 = vmatprep.subr.mxu0 0.0
        %1192 = vmatpush2.msra.mxu0 0.0
        %1193 = vmatprep.subr.mxu0 0.0
        %1194 = vmatpush2.msra.mxu0 0.0
        %1195 = vmatprep.subr.mxu0 0.0
        %1196 = vmatpush2.msra.mxu0 0.0
        %1197 = vmatprep.subr.mxu0 0.0
        %1198 = vmatpush2.msra.mxu0 0.0
        %1199 = vmatprep.subr.mxu0 0.0
        %1200 = vmatpush2.msra.mxu0 0.0
        %1201 = vmatprep.subr.mxu0 0.0
        %1202 = vmatpush2.msra.mxu0 0.0
        %1203 = vmatprep.subr.mxu0 0.0
        %1204 = vmatpush2.msra.mxu0 0.0
        %1205 = vmatprep.subr.mxu0 0.0
        %1206 = vmatpush2.msra.mxu0 0.0
        %1207 = vmatprep.subr.mxu0 0.0
        %1208 = vmatpush2.msra.mxu0 0.0
        %1209 = vmatprep.subr.mxu0 0.0
        %1210 = vmatpush2.msra.mxu0 0.0
        %1211 = vmatprep.subr.mxu0 0.0
        %1212 = vmatpush2.msra.mxu0 0.0
        %1213 = vmatprep.subr.mxu0 0.0
        %1214 = vmatpush2.msra.mxu0 0.0
        %1215 = vmatprep.subr.mxu0 0.0
        %1216 = vmatpush2.msra.mxu0 0.0
        %1217 = vmatprep.subr.mxu0 0.0
        %1218 = vmatpush2.msra.mxu0 0.0
        %1219 = vmatprep.mubr.f32.mxu0 0.0
        %1220 = vmatmul.mubr.f32.gmra.mxu0 %v616
        %v1221 = vpop.f32.mrf.mxu0
        %v1222 = vadd.f32 0.0, %v1221
        %v1223 = vpop.f32.mrf.mxu0
        %v1224 = vadd.f32 0.0, %v1223
        %1225 = vmatprep.mubr.f32.mxu0 0.0
        %1226 = vmatmul.mubr.f32.gmra.mxu0 %v619
        %v1227 = vpop.f32.mrf.mxu0
        %v1228 = vadd.f32 0.0, %v1227
        %v1229 = vpop.f32.mrf.mxu0
        %v1230 = vadd.f32 0.0, %v1229
        %1231 = vdwg.mxu0
        %v1233 = vlaneseq
        %v1234 = vshrl.u32 %v1233, 7
        %v1235 = vsub.s32 0, %v1234
        %v1236 = vrot.slane %v1066, %v1235
        %v1237 = vlaneseq
        %v1238 = vshrl.u32 %v1237, 7
        %v1239 = vsub.s32 1, %v1238
        %v1240 = vrot.slane %v1066, %v1239
        %1243 = vmatprep.subr.mxu0 %v966
        %1244 = vmatpush1.msra.mxu0 %v965
        %1245 = vmatprep.subr.mxu0 %v964
        %1246 = vmatpush1.msra.mxu0 %v963
        %1247 = vmatprep.subr.mxu0 %v962
        %1248 = vmatpush1.msra.mxu0 %v961
        %1249 = vmatprep.subr.mxu0 %v960
        %1250 = vmatpush1.msra.mxu0 %v959
        %1251 = vmatprep.subr.mxu0 %v958
        %1252 = vmatpush1.msra.mxu0 %v957
        %1253 = vmatprep.subr.mxu0 %v956
        %1254 = vmatpush1.msra.mxu0 %v955
        %1255 = vmatprep.subr.mxu0 %v954
        %1256 = vmatpush1.msra.mxu0 %v953
        %1257 = vmatprep.subr.mxu0 %v952
        %1258 = vmatpush1.msra.mxu0 %v951
        %1259 = vmatprep.subr.mxu0 %v950
        %1260 = vmatpush1.msra.mxu0 %v949
        %1261 = vmatprep.subr.mxu0 %v948
        %1262 = vmatpush1.msra.mxu0 %v947
        %1263 = vmatprep.subr.mxu0 %v946
        %1264 = vmatpush1.msra.mxu0 %v945
        %1265 = vmatprep.subr.mxu0 %v944
        %1266 = vmatpush1.msra.mxu0 %v943
        %1267 = vmatprep.subr.mxu0 %v942
        %1268 = vmatpush1.msra.mxu0 %v941
        %1269 = vmatprep.subr.mxu0 %v940
        %1270 = vmatpush1.msra.mxu0 %v939
        %1271 = vmatprep.subr.mxu0 %v938
        %1272 = vmatpush1.msra.mxu0 %v937
        %1273 = vmatprep.subr.mxu0 %v936
        %1274 = vmatpush1.msra.mxu0 %v935
        %1275 = vmatprep.subr.mxu0 %v998
        %1276 = vmatpush2.msra.mxu0 %v997
        %1277 = vmatprep.subr.mxu0 %v996
        %1278 = vmatpush2.msra.mxu0 %v995
        %1279 = vmatprep.subr.mxu0 %v994
        %1280 = vmatpush2.msra.mxu0 %v993
        %1281 = vmatprep.subr.mxu0 %v992
        %1282 = vmatpush2.msra.mxu0 %v991
        %1283 = vmatprep.subr.mxu0 %v990
        %1284 = vmatpush2.msra.mxu0 %v989
        %1285 = vmatprep.subr.mxu0 %v988
        %1286 = vmatpush2.msra.mxu0 %v987
        %1287 = vmatprep.subr.mxu0 %v986
        %1288 = vmatpush2.msra.mxu0 %v985
        %1289 = vmatprep.subr.mxu0 %v984
        %1290 = vmatpush2.msra.mxu0 %v983
        %1291 = vmatprep.subr.mxu0 %v982
        %1292 = vmatpush2.msra.mxu0 %v981
        %1293 = vmatprep.subr.mxu0 %v980
        %1294 = vmatpush2.msra.mxu0 %v979
        %1295 = vmatprep.subr.mxu0 %v978
        %1296 = vmatpush2.msra.mxu0 %v977
        %1297 = vmatprep.subr.mxu0 %v976
        %1298 = vmatpush2.msra.mxu0 %v975
        %1299 = vmatprep.subr.mxu0 %v974
        %1300 = vmatpush2.msra.mxu0 %v973
        %1301 = vmatprep.subr.mxu0 %v972
        %1302 = vmatpush2.msra.mxu0 %v971
        %1303 = vmatprep.subr.mxu0 %v970
        %1304 = vmatpush2.msra.mxu0 %v969
        %1305 = vmatprep.subr.mxu0 %v968
        %1306 = vmatpush2.msra.mxu0 %v967
        %1307 = vmatprep.mubr.f32.mxu0 %v1147
        %1308 = vmatmul.mubr.f32.gmra.mxu0 %v1145
        %v1309 = vpop.f32.mrf.mxu0
        %v1310 = vadd.f32 %v1236, %v1309
        %v1311 = vpop.f32.mrf.mxu0
        %v1312 = vadd.f32 %v1240, %v1311
        %1313 = vmatprep.mubr.f32.mxu0 %v1153
        %1314 = vmatmul.mubr.f32.gmra.mxu0 %v1151
        %v1315 = vpop.f32.mrf.mxu0
        %v1316 = vadd.f32 %v1236, %v1315
        %v1317 = vpop.f32.mrf.mxu0
        %v1318 = vadd.f32 %v1240, %v1317
        %1319 = vdwg.mxu0
        %1320 = vmatprep.subr.mxu0 %v1030
        %1321 = vmatpush1.msra.mxu0 %v1029
        %1322 = vmatprep.subr.mxu0 %v1028
        %1323 = vmatpush1.msra.mxu0 %v1027
        %1324 = vmatprep.subr.mxu0 %v1026
        %1325 = vmatpush1.msra.mxu0 %v1025
        %1326 = vmatprep.subr.mxu0 %v1024
        %1327 = vmatpush1.msra.mxu0 %v1023
        %1328 = vmatprep.subr.mxu0 %v1022
        %1329 = vmatpush1.msra.mxu0 %v1021
        %1330 = vmatprep.subr.mxu0 %v1020
        %1331 = vmatpush1.msra.mxu0 %v1019
        %1332 = vmatprep.subr.mxu0 %v1018
        %1333 = vmatpush1.msra.mxu0 %v1017
        %1334 = vmatprep.subr.mxu0 %v1016
        %1335 = vmatpush1.msra.mxu0 %v1015
        %1336 = vmatprep.subr.mxu0 %v1014
        %1337 = vmatpush1.msra.mxu0 %v1013
        %1338 = vmatprep.subr.mxu0 %v1012
        %1339 = vmatpush1.msra.mxu0 %v1011
        %1340 = vmatprep.subr.mxu0 %v1010
        %1341 = vmatpush1.msra.mxu0 %v1009
        %1342 = vmatprep.subr.mxu0 %v1008
        %1343 = vmatpush1.msra.mxu0 %v1007
        %1344 = vmatprep.subr.mxu0 %v1006
        %1345 = vmatpush1.msra.mxu0 %v1005
        %1346 = vmatprep.subr.mxu0 %v1004
        %1347 = vmatpush1.msra.mxu0 %v1003
        %1348 = vmatprep.subr.mxu0 %v1002
        %1349 = vmatpush1.msra.mxu0 %v1001
        %1350 = vmatprep.subr.mxu0 %v1000
        %1351 = vmatpush1.msra.mxu0 %v999
        %1352 = vmatprep.subr.mxu0 %v1062
        %1353 = vmatpush2.msra.mxu0 %v1061
        %1354 = vmatprep.subr.mxu0 %v1060
        %1355 = vmatpush2.msra.mxu0 %v1059
        %1356 = vmatprep.subr.mxu0 %v1058
        %1357 = vmatpush2.msra.mxu0 %v1057
        %1358 = vmatprep.subr.mxu0 %v1056
        %1359 = vmatpush2.msra.mxu0 %v1055
        %1360 = vmatprep.subr.mxu0 %v1054
        %1361 = vmatpush2.msra.mxu0 %v1053
        %1362 = vmatprep.subr.mxu0 %v1052
        %1363 = vmatpush2.msra.mxu0 %v1051
        %1364 = vmatprep.subr.mxu0 %v1050
        %1365 = vmatpush2.msra.mxu0 %v1049
        %1366 = vmatprep.subr.mxu0 %v1048
        %1367 = vmatpush2.msra.mxu0 %v1047
        %1368 = vmatprep.subr.mxu0 %v1046
        %1369 = vmatpush2.msra.mxu0 %v1045
        %1370 = vmatprep.subr.mxu0 %v1044
        %1371 = vmatpush2.msra.mxu0 %v1043
        %1372 = vmatprep.subr.mxu0 %v1042
        %1373 = vmatpush2.msra.mxu0 %v1041
        %1374 = vmatprep.subr.mxu0 %v1040
        %1375 = vmatpush2.msra.mxu0 %v1039
        %1376 = vmatprep.subr.mxu0 %v1038
        %1377 = vmatpush2.msra.mxu0 %v1037
        %1378 = vmatprep.subr.mxu0 %v1036
        %1379 = vmatpush2.msra.mxu0 %v1035
        %1380 = vmatprep.subr.mxu0 %v1034
        %1381 = vmatpush2.msra.mxu0 %v1033
        %1382 = vmatprep.subr.mxu0 %v1032
        %1383 = vmatpush2.msra.mxu0 %v1031
        %1384 = vmatprep.mubr.f32.mxu0 %v1224
        %1385 = vmatmul.mubr.f32.gmra.mxu0 %v1222
        %v1386 = vpop.f32.mrf.mxu0
        %v1387 = vadd.f32 %v1310, %v1386
        %v1388 = vpop.f32.mrf.mxu0
        %v1389 = vadd.f32 %v1312, %v1388
        %1390 = vmatprep.mubr.f32.mxu0 %v1230
        %1391 = vmatmul.mubr.f32.gmra.mxu0 %v1228
        %v1392 = vpop.f32.mrf.mxu0
        %v1393 = vadd.f32 %v1316, %v1392
        %v1394 = vpop.f32.mrf.mxu0
        %v1395 = vadd.f32 %v1318, %v1394
        %1396 = vdwg.mxu0
        %v1397 = vmul.f32 %v1387, 0.01
        %v1398 = vmul.f32 %v1393, 0.01
        %v1399 = vmax.f32 %v1387, %v1397
        %v1400 = vmax.f32 %v1393, %v1398
        %v1401 = vmax.f32 %v1389, 0.0
        %v1402 = vmax.f32 %v1395, 0.0
        %v1403 = vadd.f32 %v1399, %v1401
        %v1404 = vadd.f32 %v1400, %v1402
        %v1405 = vld [vmem:[#allocation10] sm:$0xff]
        %v1406 = vld [vmem:[#allocation10 + $0x8] sm:$0xff]
        %v1407 = vld [vmem:[#allocation10 + $0x10] sm:$0xff]
        %v1408 = vld [vmem:[#allocation10 + $0x18] sm:$0xff]
        %v1409 = vld [vmem:[#allocation10 + $0x20] sm:$0xff]
        %v1410 = vld [vmem:[#allocation10 + $0x28] sm:$0xff]
        %v1411 = vld [vmem:[#allocation10 + $0x30] sm:$0xff]
        %v1412 = vld [vmem:[#allocation10 + $0x38] sm:$0xff]
        %v1413 = vld [vmem:[#allocation10 + $0x40] sm:$0xff]
        %v1414 = vld [vmem:[#allocation10 + $0x48] sm:$0xff]
        %v1415 = vld [vmem:[#allocation10 + $0x50] sm:$0xff]
        %v1416 = vld [vmem:[#allocation10 + $0x58] sm:$0xff]
        %v1417 = vld [vmem:[#allocation10 + $0x60] sm:$0xff]
        %v1418 = vld [vmem:[#allocation10 + $0x68] sm:$0xff]
        %v1419 = vld [vmem:[#allocation10 + $0x70] sm:$0xff]
        %v1420 = vld [vmem:[#allocation10 + $0x78] sm:$0xff]
        %v1421 = vld [vmem:[#allocation10 + $0x80] sm:$0x1]
        %v1422 = vlaneseq
        %v1423 = vshrl.u32 %v1422, 7
        %v1424 = vsub.s32 0, %v1423
        %v1425 = vrot.slane %v1421, %v1424
        %1426 = vmatprep.subr.mxu0 0.0
        %1427 = vmatpush1.msra.mxu0 %v1420
        %1428 = vmatprep.subr.mxu0 0.0
        %1429 = vmatpush1.msra.mxu0 %v1419
        %1430 = vmatprep.subr.mxu0 0.0
        %1431 = vmatpush1.msra.mxu0 %v1418
        %1432 = vmatprep.subr.mxu0 0.0
        %1433 = vmatpush1.msra.mxu0 %v1417
        %1434 = vmatprep.subr.mxu0 0.0
        %1435 = vmatpush1.msra.mxu0 %v1416
        %1436 = vmatprep.subr.mxu0 0.0
        %1437 = vmatpush1.msra.mxu0 %v1415
        %1438 = vmatprep.subr.mxu0 0.0
        %1439 = vmatpush1.msra.mxu0 %v1414
        %1440 = vmatprep.subr.mxu0 0.0
        %1441 = vmatpush1.msra.mxu0 %v1413
        %1442 = vmatprep.subr.mxu0 0.0
        %1443 = vmatpush1.msra.mxu0 %v1412
        %1444 = vmatprep.subr.mxu0 0.0
        %1445 = vmatpush1.msra.mxu0 %v1411
        %1446 = vmatprep.subr.mxu0 0.0
        %1447 = vmatpush1.msra.mxu0 %v1410
        %1448 = vmatprep.subr.mxu0 0.0
        %1449 = vmatpush1.msra.mxu0 %v1409
        %1450 = vmatprep.subr.mxu0 0.0
        %1451 = vmatpush1.msra.mxu0 %v1408
        %1452 = vmatprep.subr.mxu0 0.0
        %1453 = vmatpush1.msra.mxu0 %v1407
        %1454 = vmatprep.subr.mxu0 0.0
        %1455 = vmatpush1.msra.mxu0 %v1406
        %1456 = vmatprep.subr.mxu0 0.0
        %1457 = vmatpush1.msra.mxu0 %v1405
        %1458 = vmatprep.subr.mxu0 0.0
        %1459 = vmatpush2.msra.mxu0 0.0
        %1460 = vmatprep.subr.mxu0 0.0
        %1461 = vmatpush2.msra.mxu0 0.0
        %1462 = vmatprep.subr.mxu0 0.0
        %1463 = vmatpush2.msra.mxu0 0.0
        %1464 = vmatprep.subr.mxu0 0.0
        %1465 = vmatpush2.msra.mxu0 0.0
        %1466 = vmatprep.subr.mxu0 0.0
        %1467 = vmatpush2.msra.mxu0 0.0
        %1468 = vmatprep.subr.mxu0 0.0
        %1469 = vmatpush2.msra.mxu0 0.0
        %1470 = vmatprep.subr.mxu0 0.0
        %1471 = vmatpush2.msra.mxu0 0.0
        %1472 = vmatprep.subr.mxu0 0.0
        %1473 = vmatpush2.msra.mxu0 0.0
        %1474 = vmatprep.subr.mxu0 0.0
        %1475 = vmatpush2.msra.mxu0 0.0
        %1476 = vmatprep.subr.mxu0 0.0
        %1477 = vmatpush2.msra.mxu0 0.0
        %1478 = vmatprep.subr.mxu0 0.0
        %1479 = vmatpush2.msra.mxu0 0.0
        %1480 = vmatprep.subr.mxu0 0.0
        %1481 = vmatpush2.msra.mxu0 0.0
        %1482 = vmatprep.subr.mxu0 0.0
        %1483 = vmatpush2.msra.mxu0 0.0
        %1484 = vmatprep.subr.mxu0 0.0
        %1485 = vmatpush2.msra.mxu0 0.0
        %1486 = vmatprep.subr.mxu0 0.0
        %1487 = vmatpush2.msra.mxu0 0.0
        %1488 = vmatprep.subr.mxu0 0.0
        %1489 = vmatpush2.msra.mxu0 0.0
        %1490 = vmatprep.mubr.f32.mxu0 0.0
        %1491 = vmatmul.mubr.f32.gmra.mxu0 %v1403
        %v1492 = vpop.f32.mrf.mxu0
        %v1493 = vadd.f32 %v1425, %v1492
        %v1494 = vpop.f32.mrf.mxu0
        %1495 = vmatprep.mubr.f32.mxu0 0.0
        %1496 = vmatmul.mubr.f32.gmra.mxu0 %v1404
        %v1497 = vpop.f32.mrf.mxu0
        %v1498 = vadd.f32 %v1425, %v1497
        %v1499 = vpop.f32.mrf.mxu0
        %1500 = vdwg.mxu0
        %1501 = vmax.xlane.f32.xlu0 %v1493
        %v1502 = vpop.xlane.xlu0 %1501
        %1503 = vmax.xlane.f32.xlu0 %v1498
        %v1504 = vpop.xlane.xlu0 %1503
        %v1505 = vsub.f32 %v1493, %v1502
        %v1506 = vsub.f32 %v1498, %v1504
        %v1507 = vmul.f32 %v1505, 1.442695
        %v1508 = vpow.pop %v1507
        %v1509 = vmul.f32 %v1506, 1.442695
        %v1510 = vpow.pop %v1509
        %1511 = vadd.xlane.f32.xlu0 %v1508
        %v1512 = vpop.xlane.xlu0 %1511
        %1513 = vadd.xlane.f32.xlu0 %v1510
        %v1514 = vpop.xlane.xlu0 %1513
        %v1515 = vlog2.pop %v1512
        %v1516 = vmul.f32 %v1515, 0.6931472
        %v1517 = vlog2.pop %v1514
        %v1518 = vmul.f32 %v1517, 0.6931472
        %v1519 = vsub.f32 %v1505, %v1516
        %v1520 = vsub.f32 %v1506, %v1518
        %1521 = vst [vmem:[%s325] sm:$0xff] %v1519
        %1522 = vst [vmem:[%s325 + $0x8] sm:$0xff] %v1520
        %s1523 = sand.u32 %s149, 1
        %s1524 = scalar_lea.sflag [#allocation4], %s1523
        %s1525 = sand.u32 %s149, 1
        %s1526 = smul.addr %s1525, 16
        %s1527 = scalar_lea.vmem [#allocation11], %s1526
        // Predicated region
        $region61: #{tpu_custom_call.1} parent=39 // pred_check
          %p1528 = pneg %p159
        $region62: #{tpu_custom_call.1} parent=39 // pred_check_branch
          %1530 = sbr.rel (%p1528) target = $region64
        $region63: #{tpu_custom_call.1} parent=39 // pred_region
          %s1532 = ssub.s32 256, 256
          %1533 = vsyncadd %s1524, %s1532
          %s1534 = smul.addr %s26, 2
          %s1535 = smul.addr %s1534, 128
          %s1536 = scalar_lea.hbm %s5, %s1535
          %s1537 = sshll.u32 %s1527, 4
          %s1538 = int_to_ptr.vmem [resolvable:$true] %s1537
          %1543 = dma.vmem_to_hbm [thread:$0]  %s1538, 256, %s1536, %s1524, 128, 128, 8
        $region64: #{tpu_custom_call.1} parent=39 // pred_fallthru
          _
      $region40: #{tpu_custom_call.1} parent=5 // pred_fallthru
        _
      %p1544 = scmp.le.s32.totalorder 2, %s21
      // Predicated region
      $region65: #{tpu_custom_call.1} parent=5 // pred_check
        %p1545 = pneg %p1544
      $region66: #{tpu_custom_call.1} parent=5 // pred_check_branch
        %1547 = sbr.rel (%p1545) target = $region68
      $region67: #{tpu_custom_call.1} parent=5 // pred_region
        %s1548 = ssub.s32 %s21, 2
        // Predicated region
        $region69: #{tpu_custom_call.1} parent=67 // pred_check
          %p1549 = pneg %p165
        $region70: #{tpu_custom_call.1} parent=67 // pred_check_branch
          %1551 = sbr.rel (%p1549) target = $region72
        $region71: #{tpu_custom_call.1} parent=67 // pred_region
          %s1552 = sand.u32 %s150, 1
          %s1553 = scalar_lea.sflag [#allocation4], %s1552
          %s1554 = sand.u32 %s150, 1
          %s1555 = smul.addr %s1554, 16
          %s1556 = scalar_lea.vmem [#allocation11], %s1555
          %1557 = dma.done %s1553, 256
        $region72: #{tpu_custom_call.1} parent=67 // pred_fallthru
          _
      $region68: #{tpu_custom_call.1} parent=5 // pred_fallthru
        _
    $region6: #{tpu_custom_call.1} parent=1 // loop_footer
      %s25 = sadd.s32 1, %s21
    $region7: #{tpu_custom_call.1} parent=1 // loop_footer_branch
      %20 = sbr.rel target = $region3
    $region8: #{tpu_custom_call.1} parent=1 // loop_exit
      _
    %1558 = vsyncpa [#allocation3], 1
    %s1559 = scalar_lea.sflag [#allocation3], 1
    %1560 = vsyncpa %s1559, 1
    %1561 = vsyncpa [#allocation6], 1
    %s1562 = scalar_lea.sflag [#allocation6], 1
    %1563 = vsyncpa %s1562, 1
    %1564 = vsyncpa [#allocation9], 1
    %1565 = vsyncpa [#allocation4], 1
    %s1566 = scalar_lea.sflag [#allocation4], 1
    %1567 = vsyncpa %s1566, 1

</llo_original>
